<compile_context>
chip_gen: v6e
topology: v6e:2x2x1
jax: 0.10.0
libtpu: 0.0.40
codegen_flags: <defaults>
</compile_context>

<pallas_src>
import functools

import jax
import jax.numpy as jnp
from jax import lax
from jax.experimental import pallas as pl
from jax.experimental.pallas import tpu as pltpu

# Full-f32 matmul precision everywhere (kernel dots, reference einsum/conv) so
# the one-hot passthrough rows produced on the MXU stay ~exact vs. the
# reference's direct slice.
jax.config.update("jax_default_matmul_precision", "highest")


# ----------------------------------------------------------------------------
# Pallas kernel.
# Layout inside the kernel: (channels, H*W) -> channels on sublanes, HW lanes.
# Per grid step it processes a block of Bt images (unrolled).
# ----------------------------------------------------------------------------
def _block_kernel(x_ref, w1_ref, wm_ref, w2_ref, bias_ref, o_ref, *, ksize, W):
    Bt = x_ref.shape[0]
    N = x_ref.shape[-1]
    _, cmid, _ = wm_ref.shape
    chalf = w1_ref.shape[0] - cmid          # passthrough (x_proj) channels
    P = ksize // 2

    w1 = w1_ref[...]                        # (Chalf+Cmid, C)  shuffle+proj folded
    w2 = w2_ref[...]                        # (Cout, Cmid)     BN3-folded
    b1 = bias_ref[:cmid, :]                 # (Cmid, 1)
    b3 = bias_ref[cmid:, :]                 # (Cout, 1)  = b3 + W2'@b2

    for b in range(Bt):                     # static unroll over the batch block
        xb = x_ref[b]                       # (C, N) lane-dense

        # One matmul yields the proj passthrough rows (one-hot weights, exact)
        # and the pre-bias conv-branch rows.
        yy = jnp.dot(w1, xb, preferred_element_type=jnp.float32)
        o_ref[b, :chalf, :] = yy[:chalf, :]                 # one (8, N) store
        y = jnp.maximum(yy[chalf:, :] + b1, 0.0)            # pw1 + BN1 + ReLU

        # Depthwise KxK, stride 1, SAME: lane rolls (XLU) + precomputed
        # weight*mask constants (VALU multiply-add only).
        acc = wm_ref[P * ksize + P] * y                     # center tap
        for dh in range(-P, P + 1):
            for dw in range(-P, P + 1):
                off = dh * W + dw
                if off == 0:
                    continue
                t = (dh + P) * ksize + (dw + P)
                shifted = pltpu.roll(y, shift=(-off) % N, axis=1)
                acc = acc + wm_ref[t] * shifted             # (Cmid, N)

        # Final 1x1 conv (BN3 folded) + propagated bias + block ReLU.
        out = jnp.dot(w2, acc, preferred_element_type=jnp.float32)
        o_ref[b, chalf:, :] = jnp.maximum(out + b3, 0.0)


def _full_spec(a):
    nd = a.ndim
    return pl.BlockSpec(a.shape, lambda b: (0,) * nd)


def _choose_batch_block(B, per_image_bytes, vmem_budget=4 << 20,
                        min_steps=2, max_unroll=8):
    """Largest batch block that divides B, keeps >=min(min_steps,B) grid steps
    (megacore), stays under a modest VMEM budget and a modest unroll factor."""
    best = 1
    for bt in range(1, B + 1):
        if B % bt or bt > max_unroll:
            continue
        if B // bt < min(min_steps, B):
            continue
        if bt * per_image_bytes > vmem_budget:
            continue
        best = bt
    return best


def shuffle_block_pallas(x_nchw, kp, *, ksize=3, core_parallel=False):
    """Fused ShuffleNetV2BlockSearched forward (stride=1, 3x3), NCHW in/out."""
    B, C, H, W = x_nchw.shape
    N = H * W
    chalf = C // 2
    cout_b = kp["w2"].shape[0]
    c_out_total = chalf + cout_b

    x_flat = x_nchw.reshape(B, C, N)                    # free view of NCHW
    bt = _choose_batch_block(B, per_image_bytes=(C + c_out_total) * N * 4)

    weight_args = (kp["w1"], kp["wm"], kp["w2"], kp["bias"])
    kernel = functools.partial(_block_kernel, ksize=ksize, W=W)

    # On v7x pass core_parallel=True to force the explicit megacore split of the
    # batch grid axis; plain "parallel" compiles everywhere.
    semantics = (pltpu.CORE_PARALLEL,) if core_parallel else ("parallel",)

    out_flat = pl.pallas_call(
        kernel,
        out_shape=jax.ShapeDtypeStruct((B, c_out_total, N), jnp.float32),
        grid_spec=pltpu.PrefetchScalarGridSpec(
            num_scalar_prefetch=0,
            grid=(B // bt,),
            in_specs=[pl.BlockSpec((bt, C, N), lambda b: (b, 0, 0))]
                     + [_full_spec(a) for a in weight_args],
            out_specs=pl.BlockSpec((bt, c_out_total, N), lambda b: (b, 0, 0)),
        ),
        compiler_params=pltpu.CompilerParams(dimension_semantics=semantics),
    )(x_flat, *weight_args)
    return out_flat.reshape(B, c_out_total, H, W)


# ----------------------------------------------------------------------------
# Convert PyTorch-shaped weights into kernel-ready arrays (all BN folded,
# channel shuffle + x_proj passthrough folded into w1, depthwise tap weights
# pre-multiplied by the boundary masks).
# ----------------------------------------------------------------------------
def prepare_kernel_params(pt, in_channels, H, W):
    C = in_channels
    chalf = C // 2
    cmid = pt["w1_pt"].shape[0]
    K = pt["wdw_pt"].shape[-1]
    P = K // 2
    N = H * W

    # channel_shuffle1 permutation: new channel i <- orig (i % 2)*C/2 + i//2
    new2orig = [(i % 2) * chalf + i // 2 for i in range(C)]
    proj_idx = jnp.asarray(new2orig[:chalf], jnp.int32)       # passthrough rows
    branch_idx = jnp.asarray(new2orig[chalf:], jnp.int32)     # conv-branch input

    # ---- BN folds -----------------------------------------------------------
    w1 = pt["s1"][:, None] * pt["w1_pt"][:, :, 0, 0]          # (Cmid, Cin_b)
    wdw = pt["s2"][:, None] * pt["wdw_pt"][:, 0].reshape(cmid, K * K)
    w2 = pt["s3"][:, None] * pt["w2_pt"][:, :, 0, 0]          # (Cout_b, Cmid)
    b1 = pt["b1"]                                             # (Cmid,)
    b3 = pt["b3"] + w2 @ pt["b2"]                             # b2 pushed through

    # ---- shuffle-select into w1 + one-hot passthrough rows on top -----------
    w1_full = jnp.zeros((cmid, C), jnp.float32).at[:, branch_idx].set(w1)
    onehot = jnp.zeros((chalf, C), jnp.float32).at[
        jnp.arange(chalf), proj_idx].set(1.0)
    w1_big = jnp.concatenate([onehot, w1_full], axis=0)       # (Chalf+Cmid, C)

    # ---- per-tap (weight * boundary-mask) constants for the depthwise conv --
    pos = jnp.arange(N)
    row, col = pos // W, pos % W
    masks = []
    for dh in range(-P, P + 1):
        for dw in range(-P, P + 1):
            ok = (row + dh >= 0) & (row + dh < H) & \
                 (col + dw >= 0) & (col + dw < W)
            masks.append(ok.astype(jnp.float32))
    mask = jnp.stack(masks)                                   # (K*K, N)
    wm = wdw.T[:, :, None] * mask[:, None, :]                 # (K*K, Cmid, N)

    bias = jnp.concatenate([b1, b3])[:, None]                 # (Cmid+Cout, 1)
    return {"w1": w1_big, "wm": wm, "w2": w2, "bias": bias}


# ----------------------------------------------------------------------------
# Pure-JAX reference (mirrors the PyTorch module, for correctness check)
# ----------------------------------------------------------------------------
def channel_shuffle1(x):
    B, C, H, W = x.shape
    x = x.reshape(B, 2, C // 2, H, W).transpose(0, 2, 1, 3, 4).reshape(B, C, H, W)
    return x[:, :C // 2], x[:, C // 2:]


def shuffle_block_ref(x_nchw, pt, *, ksize=3):
    x_proj, x = channel_shuffle1(x_nchw)
    cmid = pt["w1_pt"].shape[0]
    bn = lambda t, s, b: t * s[None, :, None, None] + b[None, :, None, None]

    y = jnp.einsum("mc,bchw->bmhw", pt["w1_pt"][:, :, 0, 0], x)
    y = jnp.maximum(bn(y, pt["s1"], pt["b1"]), 0.0)

    dwk = jnp.transpose(pt["wdw_pt"], (2, 3, 1, 0))           # (K,K,1,Cmid) HWIO
    z = lax.conv_general_dilated(
        jnp.transpose(y, (0, 2, 3, 1)), dwk, (1, 1), "SAME",
        dimension_numbers=("NHWC", "HWIO", "NHWC"), feature_group_count=cmid)
    z = bn(jnp.transpose(z, (0, 3, 1, 2)), pt["s2"], pt["b2"])

    out = jnp.einsum("oc,bchw->bohw", pt["w2_pt"][:, :, 0, 0], z)
    out = jnp.maximum(bn(out, pt["s3"], pt["b3"]), 0.0)
    return jnp.concatenate([x_proj, out], axis=1)


# ----------------------------------------------------------------------------
# Deterministic parameter construction (PyTorch-shaped weights, BN folded)
# ----------------------------------------------------------------------------
def _fold_bn(key, c, eps=1e-5):
    k1, k2, k3, k4 = jax.random.split(key, 4)
    gamma = 1.0 + 0.1 * jax.random.normal(k1, (c,), jnp.float32)
    beta = 0.1 * jax.random.normal(k2, (c,), jnp.float32)
    mean = 0.1 * jax.random.normal(k3, (c,), jnp.float32)
    var = 1.0 + 0.1 * jnp.abs(jax.random.normal(k4, (c,), jnp.float32))
    scale = gamma / jnp.sqrt(var + eps)
    bias = beta - mean * scale
    return scale, bias


def make_params(key, cin_b, cmid, cout_b, ksize=3):
    ks = jax.random.split(key, 6)
    w1_pt = 0.1 * jax.random.normal(ks[0], (cmid, cin_b, 1, 1), jnp.float32)
    wdw_pt = 0.1 * jax.random.normal(ks[1], (cmid, 1, ksize, ksize), jnp.float32)
    w2_pt = 0.1 * jax.random.normal(ks[2], (cout_b, cmid, 1, 1), jnp.float32)
    s1, b1 = _fold_bn(ks[3], cmid)
    s2, b2 = _fold_bn(ks[4], cmid)
    s3, b3 = _fold_bn(ks[5], cout_b)
    return {"w1_pt": w1_pt, "wdw_pt": wdw_pt, "w2_pt": w2_pt,
            "s1": s1, "b1": b1, "s2": s2, "b2": b2, "s3": s3, "b3": b3}


if __name__ == "__main__":
    # ShuffleNetV2BlockSearched(prefix, in_channels=16, out_channels=16,
    #                           stride=1, base_mid_channels=8, id=0)
    B, C, H, W = 2, 16, 16, 16
    base_mid_channels = 8
    ksize = 3                      # id=0 -> 'shufflenet_3x3'
    cin_b = C // 2                 # conv-branch input channels (stride=1 path)
    cout_b = C // 2                # conv-branch output channels

    key = jax.random.PRNGKey(0)
    kx, kpk = jax.random.split(key)
    x_in = jax.random.normal(kx, (B, C, H, W), jnp.float32)   # NCHW like PyTorch
    pt = make_params(kpk, cin_b, base_mid_channels, cout_b, ksize)
    kparams = prepare_kernel_params(pt, C, H, W)

    fwd = jax.jit(functools.partial(shuffle_block_pallas, ksize=ksize))
    out = jax.block_until_ready(fwd(x_in, kparams))
    assert out.shape == (B, C, H, W), out.shape

    ref = jax.block_until_ready(shuffle_block_ref(x_in, pt, ksize=ksize))
    assert jnp.allclose(out, ref, atol=1e-3, rtol=1e-3), \
        float(jnp.max(jnp.abs(out - ref)))
    print("KERNEL_OK")
</pallas_src>

<mosaic_0001>
module attributes {stable_mosaic.version = 11 : i64} {
  func.func @_block_kernel(%arg0: i32, %arg1: memref<1x16x256xf32, #tpu.memory_space<vmem>>, %arg2: memref<16x16xf32, #tpu.memory_space<vmem>>, %arg3: memref<9x8x256xf32, #tpu.memory_space<vmem>>, %arg4: memref<8x8xf32, #tpu.memory_space<vmem>>, %arg5: memref<16x1xf32, #tpu.memory_space<vmem>>, %arg6: memref<1x16x256xf32, #tpu.memory_space<vmem>>) attributes {dimension_semantics = [#tpu.dimension_semantics<parallel>], iteration_bounds = array<i64: 2>, scalar_prefetch = 0 : i64, scratch_operands = 0 : i64, tpu.core_type = #tpu.core_type<tc>, window_params = [{transform_indices = @transform_0, window_bounds = array<i64: 1, 16, 256>}, {pipeline_mode = #tpu.pipeline_mode<synchronous>, transform_indices = @transform_1, window_bounds = array<i64: 16, 16>}, {pipeline_mode = #tpu.pipeline_mode<synchronous>, transform_indices = @transform_2, window_bounds = array<i64: 9, 8, 256>}, {pipeline_mode = #tpu.pipeline_mode<synchronous>, transform_indices = @transform_3, window_bounds = array<i64: 8, 8>}, {pipeline_mode = #tpu.pipeline_mode<synchronous>, transform_indices = @transform_4, window_bounds = array<i64: 16, 1>}, {transform_indices = @transform_5, window_bounds = array<i64: 1, 16, 256>}]} {
    %c0 = arith.constant 0 : index
    %c0_0 = arith.constant 0 : index
    %0 = vector.load %arg2[%c0, %c0_0] : memref<16x16xf32, #tpu.memory_space<vmem>>, vector<16x16xf32>
    %c0_1 = arith.constant 0 : index
    %c0_2 = arith.constant 0 : index
    %1 = vector.load %arg4[%c0_1, %c0_2] : memref<8x8xf32, #tpu.memory_space<vmem>>, vector<8x8xf32>
    %c0_3 = arith.constant 0 : index
    %c0_4 = arith.constant 0 : index
    %2 = vector.load %arg5[%c0_3, %c0_4] : memref<16x1xf32, #tpu.memory_space<vmem>>, vector<8x1xf32>
    %c8 = arith.constant 8 : index
    %c0_5 = arith.constant 0 : index
    %3 = vector.load %arg5[%c8, %c0_5] : memref<16x1xf32, #tpu.memory_space<vmem>>, vector<8x1xf32>
    %c0_6 = arith.constant 0 : index
    %c0_7 = arith.constant 0 : index
    %c0_8 = arith.constant 0 : index
    %4 = vector.load %arg1[%c0_6, %c0_7, %c0_8] : memref<1x16x256xf32, #tpu.memory_space<vmem>>, vector<1x16x256xf32>
    %5 = vector.shape_cast %4 : vector<1x16x256xf32> to vector<16x256xf32>
    %cst = arith.constant dense<0.000000e+00> : vector<16x256xf32>
    %6 = tpu.matmul %0, %5, %cst {dimension_numbers = #tpu.dot_dimension_numbers<[1], [0], [0], [1], [0, 0, 1, 1], [], []>, precision = #tpu.contract_precision<fp32>} : vector<16x16xf32>, vector<16x256xf32>, vector<16x256xf32> -> vector<16x256xf32>
    %7 = vector.extract_strided_slice %6 {offsets = [0, 0], sizes = [8, 256], strides = [1, 1]} : vector<16x256xf32> to vector<8x256xf32>
    %c0_9 = arith.constant 0 : index
    %c0_10 = arith.constant 0 : index
    %c0_11 = arith.constant 0 : index
    %8 = vector.load %arg6[%c0_9, %c0_10, %c0_11] : memref<1x16x256xf32, #tpu.memory_space<vmem>>, vector<1x8x256xf32>
    %9 = vector.shape_cast %8 : vector<1x8x256xf32> to vector<8x256xf32>
    %10 = vector.shape_cast %7 : vector<8x256xf32> to vector<1x8x256xf32>
    tpu.vector_store %arg6[%c0_9, %c0_10, %c0_11], %10 {strides = array<i32>} : memref<1x16x256xf32, #tpu.memory_space<vmem>>, vector<1x8x256xf32>,
    %11 = vector.extract_strided_slice %6 {offsets = [8, 0], sizes = [8, 256], strides = [1, 1]} : vector<16x256xf32> to vector<8x256xf32>
    %12 = vector.broadcast %2 : vector<8x1xf32> to vector<8x256xf32>
    %13 = arith.addf %11, %12 : vector<8x256xf32>
    %cst_12 = arith.constant 0.000000e+00 : f32
    %14 = vector.broadcast %cst_12 : f32 to vector<8x256xf32>
    %15 = arith.maximumf %13, %14 : vector<8x256xf32>
    %c4 = arith.constant 4 : index
    %c0_13 = arith.constant 0 : index
    %c0_14 = arith.constant 0 : index
    %16 = vector.load %arg3[%c4, %c0_13, %c0_14] : memref<9x8x256xf32, #tpu.memory_space<vmem>>, vector<1x8x256xf32>
    %17 = vector.shape_cast %16 : vector<1x8x256xf32> to vector<8x256xf32>
    %18 = arith.mulf %17, %15 : vector<8x256xf32>
    %c17_i32 = arith.constant 17 : i32
    %19 = tpu.dynamic_rotate %15 by %c17_i32 dim 1 : vector<8x256xf32>, i32 -> vector<8x256xf32>
    %c0_15 = arith.constant 0 : index
    %c0_16 = arith.constant 0 : index
    %c0_17 = arith.constant 0 : index
    %20 = vector.load %arg3[%c0_15, %c0_16, %c0_17] : memref<9x8x256xf32, #tpu.memory_space<vmem>>, vector<1x8x256xf32>
    %21 = vector.shape_cast %20 : vector<1x8x256xf32> to vector<8x256xf32>
    %22 = arith.mulf %21, %19 : vector<8x256xf32>
    %23 = arith.addf %18, %22 : vector<8x256xf32>
    %c16_i32 = arith.constant 16 : i32
    %24 = tpu.dynamic_rotate %15 by %c16_i32 dim 1 : vector<8x256xf32>, i32 -> vector<8x256xf32>
    %c1 = arith.constant 1 : index
    %c0_18 = arith.constant 0 : index
    %c0_19 = arith.constant 0 : index
    %25 = vector.load %arg3[%c1, %c0_18, %c0_19] : memref<9x8x256xf32, #tpu.memory_space<vmem>>, vector<1x8x256xf32>
    %26 = vector.shape_cast %25 : vector<1x8x256xf32> to vector<8x256xf32>
    %27 = arith.mulf %26, %24 : vector<8x256xf32>
    %28 = arith.addf %23, %27 : vector<8x256xf32>
    %c15_i32 = arith.constant 15 : i32
    %29 = tpu.dynamic_rotate %15 by %c15_i32 dim 1 : vector<8x256xf32>, i32 -> vector<8x256xf32>
    %c2 = arith.constant 2 : index
    %c0_20 = arith.constant 0 : index
    %c0_21 = arith.constant 0 : index
    %30 = vector.load %arg3[%c2, %c0_20, %c0_21] : memref<9x8x256xf32, #tpu.memory_space<vmem>>, vector<1x8x256xf32>
    %31 = vector.shape_cast %30 : vector<1x8x256xf32> to vector<8x256xf32>
    %32 = arith.mulf %31, %29 : vector<8x256xf32>
    %33 = arith.addf %28, %32 : vector<8x256xf32>
    %c1_i32 = arith.constant 1 : i32
    %34 = tpu.dynamic_rotate %15 by %c1_i32 dim 1 : vector<8x256xf32>, i32 -> vector<8x256xf32>
    %c3 = arith.constant 3 : index
    %c0_22 = arith.constant 0 : index
    %c0_23 = arith.constant 0 : index
    %35 = vector.load %arg3[%c3, %c0_22, %c0_23] : memref<9x8x256xf32, #tpu.memory_space<vmem>>, vector<1x8x256xf32>
    %36 = vector.shape_cast %35 : vector<1x8x256xf32> to vector<8x256xf32>
    %37 = arith.mulf %36, %34 : vector<8x256xf32>
    %38 = arith.addf %33, %37 : vector<8x256xf32>
    %c255_i32 = arith.constant 255 : i32
    %39 = tpu.dynamic_rotate %15 by %c255_i32 dim 1 : vector<8x256xf32>, i32 -> vector<8x256xf32>
    %c5 = arith.constant 5 : index
    %c0_24 = arith.constant 0 : index
    %c0_25 = arith.constant 0 : index
    %40 = vector.load %arg3[%c5, %c0_24, %c0_25] : memref<9x8x256xf32, #tpu.memory_space<vmem>>, vector<1x8x256xf32>
    %41 = vector.shape_cast %40 : vector<1x8x256xf32> to vector<8x256xf32>
    %42 = arith.mulf %41, %39 : vector<8x256xf32>
    %43 = arith.addf %38, %42 : vector<8x256xf32>
    %c241_i32 = arith.constant 241 : i32
    %44 = tpu.dynamic_rotate %15 by %c241_i32 dim 1 : vector<8x256xf32>, i32 -> vector<8x256xf32>
    %c6 = arith.constant 6 : index
    %c0_26 = arith.constant 0 : index
    %c0_27 = arith.constant 0 : index
    %45 = vector.load %arg3[%c6, %c0_26, %c0_27] : memref<9x8x256xf32, #tpu.memory_space<vmem>>, vector<1x8x256xf32>
    %46 = vector.shape_cast %45 : vector<1x8x256xf32> to vector<8x256xf32>
    %47 = arith.mulf %46, %44 : vector<8x256xf32>
    %48 = arith.addf %43, %47 : vector<8x256xf32>
    %c240_i32 = arith.constant 240 : i32
    %49 = tpu.dynamic_rotate %15 by %c240_i32 dim 1 : vector<8x256xf32>, i32 -> vector<8x256xf32>
    %c7 = arith.constant 7 : index
    %c0_28 = arith.constant 0 : index
    %c0_29 = arith.constant 0 : index
    %50 = vector.load %arg3[%c7, %c0_28, %c0_29] : memref<9x8x256xf32, #tpu.memory_space<vmem>>, vector<1x8x256xf32>
    %51 = vector.shape_cast %50 : vector<1x8x256xf32> to vector<8x256xf32>
    %52 = arith.mulf %51, %49 : vector<8x256xf32>
    %53 = arith.addf %48, %52 : vector<8x256xf32>
    %c239_i32 = arith.constant 239 : i32
    %54 = tpu.dynamic_rotate %15 by %c239_i32 dim 1 : vector<8x256xf32>, i32 -> vector<8x256xf32>
    %c8_30 = arith.constant 8 : index
    %c0_31 = arith.constant 0 : index
    %c0_32 = arith.constant 0 : index
    %55 = vector.load %arg3[%c8_30, %c0_31, %c0_32] : memref<9x8x256xf32, #tpu.memory_space<vmem>>, vector<1x8x256xf32>
    %56 = vector.shape_cast %55 : vector<1x8x256xf32> to vector<8x256xf32>
    %57 = arith.mulf %56, %54 : vector<8x256xf32>
    %58 = arith.addf %53, %57 : vector<8x256xf32>
    %cst_33 = arith.constant dense<0.000000e+00> : vector<8x256xf32>
    %59 = tpu.matmul %1, %58, %cst_33 {dimension_numbers = #tpu.dot_dimension_numbers<[1], [0], [0], [1], [0, 0, 1, 1], [], []>, precision = #tpu.contract_precision<fp32>} : vector<8x8xf32>, vector<8x256xf32>, vector<8x256xf32> -> vector<8x256xf32>
    %60 = vector.broadcast %3 : vector<8x1xf32> to vector<8x256xf32>
    %61 = arith.addf %59, %60 : vector<8x256xf32>
    %cst_34 = arith.constant 0.000000e+00 : f32
    %62 = vector.broadcast %cst_34 : f32 to vector<8x256xf32>
    %63 = arith.maximumf %61, %62 : vector<8x256xf32>
    %c0_35 = arith.constant 0 : index
    %c8_36 = arith.constant 8 : index
    %c0_37 = arith.constant 0 : index
    %64 = vector.load %arg6[%c0_35, %c8_36, %c0_37] : memref<1x16x256xf32, #tpu.memory_space<vmem>>, vector<1x8x256xf32>
    %65 = vector.shape_cast %64 : vector<1x8x256xf32> to vector<8x256xf32>
    %66 = vector.shape_cast %63 : vector<8x256xf32> to vector<1x8x256xf32>
    tpu.vector_store %arg6[%c0_35, %c8_36, %c0_37], %66 {strides = array<i32>} : memref<1x16x256xf32, #tpu.memory_space<vmem>>, vector<1x8x256xf32>,
    return
  }
  func.func @transform_0(%arg0: i32) -> (i32, i32, i32) {
    %c0_i32 = arith.constant 0 : i32
    %c0_i32_0 = arith.constant 0 : i32
    %c0_i32_1 = arith.constant 0 : i32
    return %arg0, %c0_i32, %c0_i32_0 : i32, i32, i32
  }
  func.func @transform_1(%arg0: i32) -> (i32, i32) {
    %c0_i32 = arith.constant 0 : i32
    %c0_i32_0 = arith.constant 0 : i32
    %c0_i32_1 = arith.constant 0 : i32
    return %c0_i32, %c0_i32_0 : i32, i32
  }
  func.func @transform_2(%arg0: i32) -> (i32, i32, i32) {
    %c0_i32 = arith.constant 0 : i32
    %c0_i32_0 = arith.constant 0 : i32
    %c0_i32_1 = arith.constant 0 : i32
    %c0_i32_2 = arith.constant 0 : i32
    return %c0_i32, %c0_i32_0, %c0_i32_1 : i32, i32, i32
  }
  func.func @transform_3(%arg0: i32) -> (i32, i32) {
    %c0_i32 = arith.constant 0 : i32
    %c0_i32_0 = arith.constant 0 : i32
    %c0_i32_1 = arith.constant 0 : i32
    return %c0_i32, %c0_i32_0 : i32, i32
  }
  func.func @transform_4(%arg0: i32) -> (i32, i32) {
    %c0_i32 = arith.constant 0 : i32
    %c0_i32_0 = arith.constant 0 : i32
    %c0_i32_1 = arith.constant 0 : i32
    return %c0_i32, %c0_i32_0 : i32, i32
  }
  func.func @transform_5(%arg0: i32) -> (i32, i32, i32) {
    %c0_i32 = arith.constant 0 : i32
    %c0_i32_0 = arith.constant 0 : i32
    %c0_i32_1 = arith.constant 0 : i32
    return %arg0, %c0_i32, %c0_i32_0 : i32, i32, i32
  }
}

</mosaic_0001>

<llo_original>
// kernel: shuffle_block_pallas.1
$region0: #{shuffle_block_pallas.1}
  #allocation0 [shape = 'u32[]', space=smem, size = 0x4, offset = 0x4, fixed_abs, tag = 'smem constant byte address 0x4 - core index']
  #allocation1 [shape = 'u32[144,128]{1,0:T(1,128)}', space=vmem, size = 0x12000, scoped, tag = 'internal scratch']
  %s0 = inlined_call_operand.vmem [shape: f32[2,16,256], index: 0, kind: input, shape index: {}]
  %s1 = inlined_call_operand.vmem [shape: f32[16,16], index: 1, kind: input, shape index: {}]
  %s2 = inlined_call_operand.vmem [shape: f32[9,8,256], index: 2, kind: input, shape index: {}]
  %s3 = inlined_call_operand.vmem [shape: f32[8,8], index: 3, kind: input, shape index: {}]
  %s4 = inlined_call_operand.vmem [shape: f32[16,1], index: 4, kind: input, shape index: {}]
  %s5 = inlined_call_operand.vmem [shape: f32[2,16,256], index: 5, kind: output, shape index: {}]
  %s6 = sld [smem:[#allocation0]]
  $region53: #{shuffle_block_pallas.1} parent=0
    _
  %s8 = ssub.s32 1, %s6
  %s9 = scalar_select 0, %s8, %s6
  loop: start=0, step=1, limit=4
  $region2: #{shuffle_block_pallas.1} parent=0 // loop_pre_header
    _
  $region3: #{shuffle_block_pallas.1} parent=0 // loop_header
    %s11 = sphi 0, %s15
    %p12 = scmp.ge.s32.totalorder %s11, 4
    %s21 = sphi 0, %s23
    %s24 = sphi 0, %s21
    %s25 = sphi 0, %s24
    %s41 = sphi 0, %s25
    %s45 = sphi 0, %s45
    %s47 = sphi 0, %s45
    %s48 = sphi 0, %s47
    %s62 = sphi 0, %s48
    %s66 = sphi 0, %s66
    %s68 = sphi 0, %s66
    %s69 = sphi 0, %s68
    %s83 = sphi 0, %s69
    %s87 = sphi 0, %s87
    %s89 = sphi 0, %s87
    %s90 = sphi 0, %s89
    %s104 = sphi 0, %s90
    %s108 = sphi 0, %s108
    %s110 = sphi 0, %s108
    %s111 = sphi 0, %s110
    %s125 = sphi 0, %s111
    %s131 = sphi 0, %s133
    %s134 = sphi 0, %s131
    %s135 = sphi 0, %s134
    %s151 = sphi 0, %s135
  $region4: #{shuffle_block_pallas.1} parent=0 // loop_header_branch
    %14 = sbr.rel (%p12) target = $region8
  $region5: #{shuffle_block_pallas.1} parent=0 // loop_body
    %s16 = ssub.s32 %s11, 1
    %s17 = ssub.s32 %s11, 2
    %s18 = sadd.s32 %s11, 1
    %s19 = ssub.s32 %s11, %s18
    %p20 = scmp.eq.s32.totalorder %s19, 0
    %s22 = sadd.s32 %s21, 1
    %s23 = scalar_select %p20, %s21, %s22
    %p26 = pneg %p20
    %p27 = scmp.eq.s32.totalorder %s11, 1
    %p28 = por %p26, %p27
    %p29 = scmp.ne.s32.totalorder %s21, %s24
    %p30 = scmp.eq.s32.totalorder %s11, 0
    %p31 = por %p29, %p30
    %p32 = scmp.ne.s32.totalorder %s21, %s24
    %p33 = scmp.eq.s32.totalorder %s16, 1
    %p34 = por %p32, %p33
    %p35 = scmp.ne.s32.totalorder %s24, %s25
    %p36 = scmp.eq.s32.totalorder %s16, 0
    %p37 = por %p35, %p36
    %p38 = scmp.ne.s32.totalorder %s24, %s25
    %p39 = scmp.eq.s32.totalorder %s17, 1
    %p40 = por %p38, %p39
    %p42 = scmp.ne.s32.totalorder %s25, %s41
    %p43 = scmp.eq.s32.totalorder %s17, 0
    %p44 = por %p42, %p43
    %s46 = sadd.s32 %s45, 1
    %p49 = scmp.eq.s32.totalorder %s11, 1
    %p50 = scmp.ne.s32.totalorder %s45, %s47
    %p51 = scmp.eq.s32.totalorder %s11, 0
    %p52 = por %p50, %p51
    %p53 = scmp.ne.s32.totalorder %s45, %s47
    %p54 = scmp.eq.s32.totalorder %s16, 1
    %p55 = por %p53, %p54
    %p56 = scmp.ne.s32.totalorder %s47, %s48
    %p57 = scmp.eq.s32.totalorder %s16, 0
    %p58 = por %p56, %p57
    %p59 = scmp.ne.s32.totalorder %s47, %s48
    %p60 = scmp.eq.s32.totalorder %s17, 1
    %p61 = por %p59, %p60
    %p63 = scmp.ne.s32.totalorder %s48, %s62
    %p64 = scmp.eq.s32.totalorder %s17, 0
    %p65 = por %p63, %p64
    %s67 = sadd.s32 %s66, 1
    %p70 = scmp.eq.s32.totalorder %s11, 1
    %p71 = scmp.ne.s32.totalorder %s66, %s68
    %p72 = scmp.eq.s32.totalorder %s11, 0
    %p73 = por %p71, %p72
    %p74 = scmp.ne.s32.totalorder %s66, %s68
    %p75 = scmp.eq.s32.totalorder %s16, 1
    %p76 = por %p74, %p75
    %p77 = scmp.ne.s32.totalorder %s68, %s69
    %p78 = scmp.eq.s32.totalorder %s16, 0
    %p79 = por %p77, %p78
    %p80 = scmp.ne.s32.totalorder %s68, %s69
    %p81 = scmp.eq.s32.totalorder %s17, 1
    %p82 = por %p80, %p81
    %p84 = scmp.ne.s32.totalorder %s69, %s83
    %p85 = scmp.eq.s32.totalorder %s17, 0
    %p86 = por %p84, %p85
    %s88 = sadd.s32 %s87, 1
    %p91 = scmp.eq.s32.totalorder %s11, 1
    %p92 = scmp.ne.s32.totalorder %s87, %s89
    %p93 = scmp.eq.s32.totalorder %s11, 0
    %p94 = por %p92, %p93
    %p95 = scmp.ne.s32.totalorder %s87, %s89
    %p96 = scmp.eq.s32.totalorder %s16, 1
    %p97 = por %p95, %p96
    %p98 = scmp.ne.s32.totalorder %s89, %s90
    %p99 = scmp.eq.s32.totalorder %s16, 0
    %p100 = por %p98, %p99
    %p101 = scmp.ne.s32.totalorder %s89, %s90
    %p102 = scmp.eq.s32.totalorder %s17, 1
    %p103 = por %p101, %p102
    %p105 = scmp.ne.s32.totalorder %s90, %s104
    %p106 = scmp.eq.s32.totalorder %s17, 0
    %p107 = por %p105, %p106
    %s109 = sadd.s32 %s108, 1
    %p112 = scmp.eq.s32.totalorder %s11, 1
    %p113 = scmp.ne.s32.totalorder %s108, %s110
    %p114 = scmp.eq.s32.totalorder %s11, 0
    %p115 = por %p113, %p114
    %p116 = scmp.ne.s32.totalorder %s108, %s110
    %p117 = scmp.eq.s32.totalorder %s16, 1
    %p118 = por %p116, %p117
    %p119 = scmp.ne.s32.totalorder %s110, %s111
    %p120 = scmp.eq.s32.totalorder %s16, 0
    %p121 = por %p119, %p120
    %p122 = scmp.ne.s32.totalorder %s110, %s111
    %p123 = scmp.eq.s32.totalorder %s17, 1
    %p124 = por %p122, %p123
    %p126 = scmp.ne.s32.totalorder %s111, %s125
    %p127 = scmp.eq.s32.totalorder %s17, 0
    %p128 = por %p126, %p127
    %s129 = ssub.s32 %s11, %s18
    %p130 = scmp.eq.s32.totalorder %s129, 0
    %s132 = sadd.s32 %s131, 1
    %s133 = scalar_select %p130, %s131, %s132
    %p136 = pneg %p130
    %p137 = scmp.eq.s32.totalorder %s11, 1
    %p138 = por %p136, %p137
    %p139 = scmp.ne.s32.totalorder %s131, %s134
    %p140 = scmp.eq.s32.totalorder %s11, 0
    %p141 = por %p139, %p140
    %p142 = scmp.ne.s32.totalorder %s131, %s134
    %p143 = scmp.eq.s32.totalorder %s16, 1
    %p144 = por %p142, %p143
    %p145 = scmp.ne.s32.totalorder %s134, %s135
    %p146 = scmp.eq.s32.totalorder %s16, 0
    %p147 = por %p145, %p146
    %p148 = scmp.ne.s32.totalorder %s134, %s135
    %p149 = scmp.eq.s32.totalorder %s17, 1
    %p150 = por %p148, %p149
    %p152 = scmp.ne.s32.totalorder %s135, %s151
    %p153 = scmp.eq.s32.totalorder %s17, 0
    %p154 = por %p152, %p153
    %p155 = scmp.le.s32.totalorder 1, %s11
    %p156 = scmp.lt.s32.totalorder %s11, 3
    %p157 = pnand %p155, %p156
    %p158 = pneg %p157
    // Predicated region
    $region9: #{shuffle_block_pallas.1} parent=5 // pred_check
      _
    $region10: #{shuffle_block_pallas.1} parent=5 // pred_check_branch
      %160 = sbr.rel (%p157) target = $region12
    $region11: #{shuffle_block_pallas.1} parent=5 // pred_region
      %s161 = ssub.s32 %s11, 1
      // Predicated region
      $region13: #{shuffle_block_pallas.1} parent=11 // pred_check
        %p162 = pneg %p58
      $region14: #{shuffle_block_pallas.1} parent=11 // pred_check_branch
        %164 = sbr.rel (%p162) target = $region16
      $region15: #{shuffle_block_pallas.1} parent=11 // pred_region
        _
      $region16: #{shuffle_block_pallas.1} parent=11 // pred_fallthru
        _
      // Predicated region
      $region17: #{shuffle_block_pallas.1} parent=11 // pred_check
        %p165 = pneg %p79
      $region18: #{shuffle_block_pallas.1} parent=11 // pred_check_branch
        %167 = sbr.rel (%p165) target = $region20
      $region19: #{shuffle_block_pallas.1} parent=11 // pred_region
        _
      $region20: #{shuffle_block_pallas.1} parent=11 // pred_fallthru
        _
      // Predicated region
      $region21: #{shuffle_block_pallas.1} parent=11 // pred_check
        %p168 = pneg %p100
      $region22: #{shuffle_block_pallas.1} parent=11 // pred_check_branch
        %170 = sbr.rel (%p168) target = $region24
      $region23: #{shuffle_block_pallas.1} parent=11 // pred_region
        _
      $region24: #{shuffle_block_pallas.1} parent=11 // pred_fallthru
        _
      // Predicated region
      $region25: #{shuffle_block_pallas.1} parent=11 // pred_check
        %p171 = pneg %p121
      $region26: #{shuffle_block_pallas.1} parent=11 // pred_check_branch
        %173 = sbr.rel (%p171) target = $region28
      $region27: #{shuffle_block_pallas.1} parent=11 // pred_region
        _
      $region28: #{shuffle_block_pallas.1} parent=11 // pred_fallthru
        _
    $region12: #{shuffle_block_pallas.1} parent=5 // pred_fallthru
      _
    %p174 = scmp.lt.s32.totalorder %s11, 2
    // Predicated region
    $region29: #{shuffle_block_pallas.1} parent=5 // pred_check
      %p175 = pneg %p174
    $region30: #{shuffle_block_pallas.1} parent=5 // pred_check_branch
      %177 = sbr.rel (%p175) target = $region32
    $region31: #{shuffle_block_pallas.1} parent=5 // pred_region
      // Predicated region
      $region33: #{shuffle_block_pallas.1} parent=31 // pred_check
        %p178 = pneg %p31
      $region34: #{shuffle_block_pallas.1} parent=31 // pred_check_branch
        %180 = sbr.rel (%p178) target = $region36
      $region35: #{shuffle_block_pallas.1} parent=31 // pred_region
        %p181 = scmp.lt.s32.totalorder %s11, 1
        %s182 = scalar_select %p181, %s11, 1
        %s183 = smul.addr %s182, 4
        %s184 = smul.addr %s183, 8
        %s185 = scalar_lea.vmem %s0, %s184
      $region36: #{shuffle_block_pallas.1} parent=31 // pred_fallthru
        _
    $region32: #{shuffle_block_pallas.1} parent=5 // pred_fallthru
      _
    %p186 = scmp.le.s32.totalorder 1, %s11
    %p187 = scmp.lt.s32.totalorder %s11, 3
    %p188 = pnand %p186, %p187
    %p189 = pneg %p188
    // Predicated region
    $region37: #{shuffle_block_pallas.1} parent=5 // pred_check
      _
    $region38: #{shuffle_block_pallas.1} parent=5 // pred_check_branch
      %191 = sbr.rel (%p188) target = $region40
    $region39: #{shuffle_block_pallas.1} parent=5 // pred_region
      %s192 = ssub.s32 %s11, 1
      %p193 = scmp.lt.s32.totalorder %s16, 1
      %s194 = scalar_select %p193, %s16, 1
      %s195 = smul.addr %s194, 4
      %s196 = smul.addr %s195, 8
      %s197 = scalar_lea.vmem %s0, %s196
      %p198 = pneg %p37
      %p199 = pneg %p34
      %p200 = pneg %p58
      %p201 = pneg %p55
      %p202 = pneg %p79
      %p203 = pneg %p76
      %p204 = pneg %p100
      %p205 = pneg %p97
      %p206 = pneg %p121
      %p207 = pneg %p118
      %p208 = pneg %p147
      %p209 = pneg %p144
      %p210 = scmp.lt.s32.totalorder %s16, 1
      %s211 = scalar_select %p210, %s16, 1
      %s212 = smul.addr %s211, 4
      %s213 = smul.addr %s212, 8
      %s214 = scalar_lea.vmem %s5, %s213
      %p215 = scmp.lt.s32.totalorder %s16, 1
      %s216 = scalar_select %p215, %s16, 1
      %s217 = smul.addr %s216, 4
      %s218 = smul.addr %s217, 8
      %s219 = scalar_lea.vmem %s0, %s218
      %p220 = scmp.lt.s32.totalorder %s16, 1
      %s221 = scalar_select %p220, %s16, 1
      %s222 = smul.addr %s221, 4
      %s223 = smul.addr %s222, 8
      %s224 = scalar_lea.vmem %s5, %s223
      %v225 = vld [vmem:[%s1] sm:$0xff]
      %v226 = vld [vmem:[%s1 + $0x8] sm:$0xff]
      %v227 = vld [vmem:[%s3] sm:$0xff]
      %v228 = vld [vmem:[%s4] sm:$0xff]
      %v229 = vld [vmem:[%s4 + $0x8] sm:$0xff]
      %v230 = vld [vmem:[%s219] sm:$0xff]
      %v231 = vld [vmem:[%s219 + $0x8] sm:$0xff]
      %v232 = vld [vmem:[%s219 + $0x10] sm:$0xff]
      %v233 = vld [vmem:[%s219 + $0x18] sm:$0xff]
      %vm234 = vcmask 130048
      %v236 = vsel %vm234, %v225, 0
      %v239 = vsel %vm234, %v226, 0
      %241 = vmatprep.subr.mxu0 0.0
      %242 = vmatpush1.msra.mxu0 0.0
      %243 = vmatprep.subr.mxu0 0.0
      %244 = vmatpush1.msra.mxu0 0.0
      %245 = vmatprep.subr.mxu0 0.0
      %246 = vmatpush1.msra.mxu0 0.0
      %247 = vmatprep.subr.mxu0 0.0
      %248 = vmatpush1.msra.mxu0 0.0
      %249 = vmatprep.subr.mxu0 0.0
      %250 = vmatpush1.msra.mxu0 0.0
      %251 = vmatprep.subr.mxu0 0.0
      %252 = vmatpush1.msra.mxu0 0.0
      %253 = vmatprep.subr.mxu0 0.0
      %254 = vmatpush1.msra.mxu0 0.0
      %255 = vmatprep.subr.mxu0 0.0
      %256 = vmatpush1.msra.mxu0 0.0
      %257 = vmatprep.subr.mxu0 0.0
      %258 = vmatpush1.msra.mxu0 0.0
      %259 = vmatprep.subr.mxu0 0.0
      %260 = vmatpush1.msra.mxu0 0.0
      %261 = vmatprep.subr.mxu0 0.0
      %262 = vmatpush1.msra.mxu0 0.0
      %263 = vmatprep.subr.mxu0 0.0
      %264 = vmatpush1.msra.mxu0 0.0
      %265 = vmatprep.subr.mxu0 0.0
      %266 = vmatpush1.msra.mxu0 0.0
      %267 = vmatprep.subr.mxu0 0.0
      %268 = vmatpush1.msra.mxu0 0.0
      %v269 = vand.u32 %v233, 4294901760
      %270 = vmatprep.subr.mxu0 %v269
      %v271 = vand.u32 %v232, 4294901760
      %272 = vmatpush1.msra.mxu0 %v271
      %v273 = vand.u32 %v231, 4294901760
      %274 = vmatprep.subr.mxu0 %v273
      %v275 = vand.u32 %v230, 4294901760
      %276 = vmatpush1.msra.mxu0 %v275
      %277 = vmatprep.subr.mxu0 0.0
      %278 = vmatpush2.msra.mxu0 0.0
      %279 = vmatprep.subr.mxu0 0.0
      %280 = vmatpush2.msra.mxu0 0.0
      %281 = vmatprep.subr.mxu0 0.0
      %282 = vmatpush2.msra.mxu0 0.0
      %283 = vmatprep.subr.mxu0 0.0
      %284 = vmatpush2.msra.mxu0 0.0
      %285 = vmatprep.subr.mxu0 0.0
      %286 = vmatpush2.msra.mxu0 0.0
      %287 = vmatprep.subr.mxu0 0.0
      %288 = vmatpush2.msra.mxu0 0.0
      %289 = vmatprep.subr.mxu0 0.0
      %290 = vmatpush2.msra.mxu0 0.0
      %291 = vmatprep.subr.mxu0 0.0
      %292 = vmatpush2.msra.mxu0 0.0
      %293 = vmatprep.subr.mxu0 0.0
      %294 = vmatpush2.msra.mxu0 0.0
      %295 = vmatprep.subr.mxu0 0.0
      %296 = vmatpush2.msra.mxu0 0.0
      %297 = vmatprep.subr.mxu0 0.0
      %298 = vmatpush2.msra.mxu0 0.0
      %299 = vmatprep.subr.mxu0 0.0
      %300 = vmatpush2.msra.mxu0 0.0
      %301 = vmatprep.subr.mxu0 0.0
      %302 = vmatpush2.msra.mxu0 0.0
      %303 = vmatprep.subr.mxu0 0.0
      %304 = vmatpush2.msra.mxu0 0.0
      %305 = vmatprep.subr.mxu0 0.0
      %306 = vmatpush2.msra.mxu0 0.0
      %307 = vmatprep.subr.mxu0 0.0
      %308 = vmatpush2.msra.mxu0 0.0
      %309 = vmatprep.mubr.f32.mxu0 0.0
      %v310 = vand.u32 %v236, 4294901760
      %v311 = vsub.f32 %v236, %v310
      %v312 = vand.u32 %v311, 4294901760
      %v313 = vsub.f32 %v311, %v312
      %v314 = vand.u32 %v313, 4294901760
      %315 = vmatmul.mubr.f32.gmra.mxu0 %v314
      %v316 = vpop.f32.mrf.mxu0
      %v317 = vadd.f32 0.0, %v316
      %v318 = vpop.f32.mrf.mxu0
      %v319 = vadd.f32 0.0, %v318
      %320 = vmatprep.mubr.f32.mxu0 0.0
      %v321 = vand.u32 %v239, 4294901760
      %v322 = vsub.f32 %v239, %v321
      %v323 = vand.u32 %v322, 4294901760
      %v324 = vsub.f32 %v322, %v323
      %v325 = vand.u32 %v324, 4294901760
      %326 = vmatmul.mubr.f32.gmra.mxu0 %v325
      %v327 = vpop.f32.mrf.mxu0
      %v328 = vadd.f32 0.0, %v327
      %v329 = vpop.f32.mrf.mxu0
      %v330 = vadd.f32 0.0, %v329
      %331 = vdwg.mxu0
      %332 = vmatprep.subr.mxu0 0.0
      %333 = vmatpush1.msra.mxu0 0.0
      %334 = vmatprep.subr.mxu0 0.0
      %335 = vmatpush1.msra.mxu0 0.0
      %336 = vmatprep.subr.mxu0 0.0
      %337 = vmatpush1.msra.mxu0 0.0
      %338 = vmatprep.subr.mxu0 0.0
      %339 = vmatpush1.msra.mxu0 0.0
      %340 = vmatprep.subr.mxu0 0.0
      %341 = vmatpush1.msra.mxu0 0.0
      %342 = vmatprep.subr.mxu0 0.0
      %343 = vmatpush1.msra.mxu0 0.0
      %344 = vmatprep.subr.mxu0 0.0
      %345 = vmatpush1.msra.mxu0 0.0
      %346 = vmatprep.subr.mxu0 0.0
      %347 = vmatpush1.msra.mxu0 0.0
      %348 = vmatprep.subr.mxu0 0.0
      %349 = vmatpush1.msra.mxu0 0.0
      %350 = vmatprep.subr.mxu0 0.0
      %351 = vmatpush1.msra.mxu0 0.0
      %352 = vmatprep.subr.mxu0 0.0
      %353 = vmatpush1.msra.mxu0 0.0
      %354 = vmatprep.subr.mxu0 0.0
      %355 = vmatpush1.msra.mxu0 0.0
      %356 = vmatprep.subr.mxu0 0.0
      %357 = vmatpush1.msra.mxu0 0.0
      %358 = vmatprep.subr.mxu0 0.0
      %359 = vmatpush1.msra.mxu0 0.0
      %v360 = vand.u32 %v233, 4294901760
      %v361 = vsub.f32 %v233, %v360
      %v362 = vand.u32 %v361, 4294901760
      %v363 = vsub.f32 %v361, %v362
      %v364 = vand.u32 %v363, 4294901760
      %365 = vmatprep.subr.mxu0 %v364
      %v366 = vand.u32 %v232, 4294901760
      %v367 = vsub.f32 %v232, %v366
      %v368 = vand.u32 %v367, 4294901760
      %v369 = vsub.f32 %v367, %v368
      %v370 = vand.u32 %v369, 4294901760
      %371 = vmatpush1.msra.mxu0 %v370
      %v372 = vand.u32 %v231, 4294901760
      %v373 = vsub.f32 %v231, %v372
      %v374 = vand.u32 %v373, 4294901760
      %v375 = vsub.f32 %v373, %v374
      %v376 = vand.u32 %v375, 4294901760
      %377 = vmatprep.subr.mxu0 %v376
      %v378 = vand.u32 %v230, 4294901760
      %v379 = vsub.f32 %v230, %v378
      %v380 = vand.u32 %v379, 4294901760
      %v381 = vsub.f32 %v379, %v380
      %v382 = vand.u32 %v381, 4294901760
      %383 = vmatpush1.msra.mxu0 %v382
      %384 = vmatprep.subr.mxu0 0.0
      %385 = vmatpush2.msra.mxu0 0.0
      %386 = vmatprep.subr.mxu0 0.0
      %387 = vmatpush2.msra.mxu0 0.0
      %388 = vmatprep.subr.mxu0 0.0
      %389 = vmatpush2.msra.mxu0 0.0
      %390 = vmatprep.subr.mxu0 0.0
      %391 = vmatpush2.msra.mxu0 0.0
      %392 = vmatprep.subr.mxu0 0.0
      %393 = vmatpush2.msra.mxu0 0.0
      %394 = vmatprep.subr.mxu0 0.0
      %395 = vmatpush2.msra.mxu0 0.0
      %396 = vmatprep.subr.mxu0 0.0
      %397 = vmatpush2.msra.mxu0 0.0
      %398 = vmatprep.subr.mxu0 0.0
      %399 = vmatpush2.msra.mxu0 0.0
      %400 = vmatprep.subr.mxu0 0.0
      %401 = vmatpush2.msra.mxu0 0.0
      %402 = vmatprep.subr.mxu0 0.0
      %403 = vmatpush2.msra.mxu0 0.0
      %404 = vmatprep.subr.mxu0 0.0
      %405 = vmatpush2.msra.mxu0 0.0
      %406 = vmatprep.subr.mxu0 0.0
      %407 = vmatpush2.msra.mxu0 0.0
      %408 = vmatprep.subr.mxu0 0.0
      %409 = vmatpush2.msra.mxu0 0.0
      %410 = vmatprep.subr.mxu0 0.0
      %411 = vmatpush2.msra.mxu0 0.0
      %412 = vmatprep.subr.mxu0 0.0
      %413 = vmatpush2.msra.mxu0 0.0
      %414 = vmatprep.subr.mxu0 0.0
      %415 = vmatpush2.msra.mxu0 0.0
      %416 = vmatprep.mubr.f32.mxu0 0.0
      %v417 = vand.u32 %v236, 4294901760
      %418 = vmatmul.mubr.f32.gmra.mxu0 %v417
      %v419 = vpop.f32.mrf.mxu0
      %v420 = vadd.f32 %v317, %v419
      %v421 = vpop.f32.mrf.mxu0
      %v422 = vadd.f32 %v319, %v421
      %423 = vmatprep.mubr.f32.mxu0 0.0
      %v424 = vand.u32 %v239, 4294901760
      %425 = vmatmul.mubr.f32.gmra.mxu0 %v424
      %v426 = vpop.f32.mrf.mxu0
      %v427 = vadd.f32 %v328, %v426
      %v428 = vpop.f32.mrf.mxu0
      %v429 = vadd.f32 %v330, %v428
      %430 = vdwg.mxu0
      %431 = vmatprep.subr.mxu0 0.0
      %432 = vmatpush1.msra.mxu0 0.0
      %433 = vmatprep.subr.mxu0 0.0
      %434 = vmatpush1.msra.mxu0 0.0
      %435 = vmatprep.subr.mxu0 0.0
      %436 = vmatpush1.msra.mxu0 0.0
      %437 = vmatprep.subr.mxu0 0.0
      %438 = vmatpush1.msra.mxu0 0.0
      %439 = vmatprep.subr.mxu0 0.0
      %440 = vmatpush1.msra.mxu0 0.0
      %441 = vmatprep.subr.mxu0 0.0
      %442 = vmatpush1.msra.mxu0 0.0
      %443 = vmatprep.subr.mxu0 0.0
      %444 = vmatpush1.msra.mxu0 0.0
      %445 = vmatprep.subr.mxu0 0.0
      %446 = vmatpush1.msra.mxu0 0.0
      %447 = vmatprep.subr.mxu0 0.0
      %448 = vmatpush1.msra.mxu0 0.0
      %449 = vmatprep.subr.mxu0 0.0
      %450 = vmatpush1.msra.mxu0 0.0
      %451 = vmatprep.subr.mxu0 0.0
      %452 = vmatpush1.msra.mxu0 0.0
      %453 = vmatprep.subr.mxu0 0.0
      %454 = vmatpush1.msra.mxu0 0.0
      %455 = vmatprep.subr.mxu0 0.0
      %456 = vmatpush1.msra.mxu0 0.0
      %457 = vmatprep.subr.mxu0 0.0
      %458 = vmatpush1.msra.mxu0 0.0
      %v459 = vand.u32 %v233, 4294901760
      %v460 = vsub.f32 %v233, %v459
      %461 = vmatprep.subr.mxu0 %v460
      %v462 = vand.u32 %v232, 4294901760
      %v463 = vsub.f32 %v232, %v462
      %464 = vmatpush1.msra.mxu0 %v463
      %v465 = vand.u32 %v231, 4294901760
      %v466 = vsub.f32 %v231, %v465
      %467 = vmatprep.subr.mxu0 %v466
      %v468 = vand.u32 %v230, 4294901760
      %v469 = vsub.f32 %v230, %v468
      %470 = vmatpush1.msra.mxu0 %v469
      %471 = vmatprep.subr.mxu0 0.0
      %472 = vmatpush2.msra.mxu0 0.0
      %473 = vmatprep.subr.mxu0 0.0
      %474 = vmatpush2.msra.mxu0 0.0
      %475 = vmatprep.subr.mxu0 0.0
      %476 = vmatpush2.msra.mxu0 0.0
      %477 = vmatprep.subr.mxu0 0.0
      %478 = vmatpush2.msra.mxu0 0.0
      %479 = vmatprep.subr.mxu0 0.0
      %480 = vmatpush2.msra.mxu0 0.0
      %481 = vmatprep.subr.mxu0 0.0
      %482 = vmatpush2.msra.mxu0 0.0
      %483 = vmatprep.subr.mxu0 0.0
      %484 = vmatpush2.msra.mxu0 0.0
      %485 = vmatprep.subr.mxu0 0.0
      %486 = vmatpush2.msra.mxu0 0.0
      %487 = vmatprep.subr.mxu0 0.0
      %488 = vmatpush2.msra.mxu0 0.0
      %489 = vmatprep.subr.mxu0 0.0
      %490 = vmatpush2.msra.mxu0 0.0
      %491 = vmatprep.subr.mxu0 0.0
      %492 = vmatpush2.msra.mxu0 0.0
      %493 = vmatprep.subr.mxu0 0.0
      %494 = vmatpush2.msra.mxu0 0.0
      %495 = vmatprep.subr.mxu0 0.0
      %496 = vmatpush2.msra.mxu0 0.0
      %497 = vmatprep.subr.mxu0 0.0
      %498 = vmatpush2.msra.mxu0 0.0
      %499 = vmatprep.subr.mxu0 0.0
      %500 = vmatpush2.msra.mxu0 0.0
      %501 = vmatprep.subr.mxu0 0.0
      %502 = vmatpush2.msra.mxu0 0.0
      %503 = vmatprep.mubr.f32.mxu0 0.0
      %v504 = vand.u32 %v236, 4294901760
      %v505 = vsub.f32 %v236, %v504
      %506 = vmatmul.mubr.f32.gmra.mxu0 %v505
      %v507 = vpop.f32.mrf.mxu0
      %v508 = vadd.f32 %v420, %v507
      %v509 = vpop.f32.mrf.mxu0
      %v510 = vadd.f32 %v422, %v509
      %511 = vmatprep.mubr.f32.mxu0 0.0
      %v512 = vand.u32 %v239, 4294901760
      %v513 = vsub.f32 %v239, %v512
      %514 = vmatmul.mubr.f32.gmra.mxu0 %v513
      %v515 = vpop.f32.mrf.mxu0
      %v516 = vadd.f32 %v427, %v515
      %v517 = vpop.f32.mrf.mxu0
      %v518 = vadd.f32 %v429, %v517
      %519 = vdwg.mxu0
      %520 = vmatprep.subr.mxu0 0.0
      %521 = vmatpush1.msra.mxu0 0.0
      %522 = vmatprep.subr.mxu0 0.0
      %523 = vmatpush1.msra.mxu0 0.0
      %524 = vmatprep.subr.mxu0 0.0
      %525 = vmatpush1.msra.mxu0 0.0
      %526 = vmatprep.subr.mxu0 0.0
      %527 = vmatpush1.msra.mxu0 0.0
      %528 = vmatprep.subr.mxu0 0.0
      %529 = vmatpush1.msra.mxu0 0.0
      %530 = vmatprep.subr.mxu0 0.0
      %531 = vmatpush1.msra.mxu0 0.0
      %532 = vmatprep.subr.mxu0 0.0
      %533 = vmatpush1.msra.mxu0 0.0
      %534 = vmatprep.subr.mxu0 0.0
      %535 = vmatpush1.msra.mxu0 0.0
      %536 = vmatprep.subr.mxu0 0.0
      %537 = vmatpush1.msra.mxu0 0.0
      %538 = vmatprep.subr.mxu0 0.0
      %539 = vmatpush1.msra.mxu0 0.0
      %540 = vmatprep.subr.mxu0 0.0
      %541 = vmatpush1.msra.mxu0 0.0
      %542 = vmatprep.subr.mxu0 0.0
      %543 = vmatpush1.msra.mxu0 0.0
      %544 = vmatprep.subr.mxu0 0.0
      %545 = vmatpush1.msra.mxu0 0.0
      %546 = vmatprep.subr.mxu0 0.0
      %547 = vmatpush1.msra.mxu0 0.0
      %v548 = vand.u32 %v233, 4294901760
      %549 = vmatprep.subr.mxu0 %v548
      %v550 = vand.u32 %v232, 4294901760
      %551 = vmatpush1.msra.mxu0 %v550
      %v552 = vand.u32 %v231, 4294901760
      %553 = vmatprep.subr.mxu0 %v552
      %v554 = vand.u32 %v230, 4294901760
      %555 = vmatpush1.msra.mxu0 %v554
      %556 = vmatprep.subr.mxu0 0.0
      %557 = vmatpush2.msra.mxu0 0.0
      %558 = vmatprep.subr.mxu0 0.0
      %559 = vmatpush2.msra.mxu0 0.0
      %560 = vmatprep.subr.mxu0 0.0
      %561 = vmatpush2.msra.mxu0 0.0
      %562 = vmatprep.subr.mxu0 0.0
      %563 = vmatpush2.msra.mxu0 0.0
      %564 = vmatprep.subr.mxu0 0.0
      %565 = vmatpush2.msra.mxu0 0.0
      %566 = vmatprep.subr.mxu0 0.0
      %567 = vmatpush2.msra.mxu0 0.0
      %568 = vmatprep.subr.mxu0 0.0
      %569 = vmatpush2.msra.mxu0 0.0
      %570 = vmatprep.subr.mxu0 0.0
      %571 = vmatpush2.msra.mxu0 0.0
      %572 = vmatprep.subr.mxu0 0.0
      %573 = vmatpush2.msra.mxu0 0.0
      %574 = vmatprep.subr.mxu0 0.0
      %575 = vmatpush2.msra.mxu0 0.0
      %576 = vmatprep.subr.mxu0 0.0
      %577 = vmatpush2.msra.mxu0 0.0
      %578 = vmatprep.subr.mxu0 0.0
      %579 = vmatpush2.msra.mxu0 0.0
      %580 = vmatprep.subr.mxu0 0.0
      %581 = vmatpush2.msra.mxu0 0.0
      %582 = vmatprep.subr.mxu0 0.0
      %583 = vmatpush2.msra.mxu0 0.0
      %584 = vmatprep.subr.mxu0 0.0
      %585 = vmatpush2.msra.mxu0 0.0
      %586 = vmatprep.subr.mxu0 0.0
      %587 = vmatpush2.msra.mxu0 0.0
      %588 = vmatprep.mubr.f32.mxu0 0.0
      %v589 = vand.u32 %v236, 4294901760
      %v590 = vsub.f32 %v236, %v589
      %v591 = vand.u32 %v590, 4294901760
      %592 = vmatmul.mubr.f32.gmra.mxu0 %v591
      %v593 = vpop.f32.mrf.mxu0
      %v594 = vadd.f32 %v508, %v593
      %v595 = vpop.f32.mrf.mxu0
      %v596 = vadd.f32 %v510, %v595
      %597 = vmatprep.mubr.f32.mxu0 0.0
      %v598 = vand.u32 %v239, 4294901760
      %v599 = vsub.f32 %v239, %v598
      %v600 = vand.u32 %v599, 4294901760
      %601 = vmatmul.mubr.f32.gmra.mxu0 %v600
      %v602 = vpop.f32.mrf.mxu0
      %v603 = vadd.f32 %v516, %v602
      %v604 = vpop.f32.mrf.mxu0
      %v605 = vadd.f32 %v518, %v604
      %606 = vdwg.mxu0
      %607 = vmatprep.subr.mxu0 0.0
      %608 = vmatpush1.msra.mxu0 0.0
      %609 = vmatprep.subr.mxu0 0.0
      %610 = vmatpush1.msra.mxu0 0.0
      %611 = vmatprep.subr.mxu0 0.0
      %612 = vmatpush1.msra.mxu0 0.0
      %613 = vmatprep.subr.mxu0 0.0
      %614 = vmatpush1.msra.mxu0 0.0
      %615 = vmatprep.subr.mxu0 0.0
      %616 = vmatpush1.msra.mxu0 0.0
      %617 = vmatprep.subr.mxu0 0.0
      %618 = vmatpush1.msra.mxu0 0.0
      %619 = vmatprep.subr.mxu0 0.0
      %620 = vmatpush1.msra.mxu0 0.0
      %621 = vmatprep.subr.mxu0 0.0
      %622 = vmatpush1.msra.mxu0 0.0
      %623 = vmatprep.subr.mxu0 0.0
      %624 = vmatpush1.msra.mxu0 0.0
      %625 = vmatprep.subr.mxu0 0.0
      %626 = vmatpush1.msra.mxu0 0.0
      %627 = vmatprep.subr.mxu0 0.0
      %628 = vmatpush1.msra.mxu0 0.0
      %629 = vmatprep.subr.mxu0 0.0
      %630 = vmatpush1.msra.mxu0 0.0
      %631 = vmatprep.subr.mxu0 0.0
      %632 = vmatpush1.msra.mxu0 0.0
      %633 = vmatprep.subr.mxu0 0.0
      %634 = vmatpush1.msra.mxu0 0.0
      %v635 = vand.u32 %v233, 4294901760
      %v636 = vsub.f32 %v233, %v635
      %v637 = vand.u32 %v636, 4294901760
      %638 = vmatprep.subr.mxu0 %v637
      %v639 = vand.u32 %v232, 4294901760
      %v640 = vsub.f32 %v232, %v639
      %v641 = vand.u32 %v640, 4294901760
      %642 = vmatpush1.msra.mxu0 %v641
      %v643 = vand.u32 %v231, 4294901760
      %v644 = vsub.f32 %v231, %v643
      %v645 = vand.u32 %v644, 4294901760
      %646 = vmatprep.subr.mxu0 %v645
      %v647 = vand.u32 %v230, 4294901760
      %v648 = vsub.f32 %v230, %v647
      %v649 = vand.u32 %v648, 4294901760
      %650 = vmatpush1.msra.mxu0 %v649
      %651 = vmatprep.subr.mxu0 0.0
      %652 = vmatpush2.msra.mxu0 0.0
      %653 = vmatprep.subr.mxu0 0.0
      %654 = vmatpush2.msra.mxu0 0.0
      %655 = vmatprep.subr.mxu0 0.0
      %656 = vmatpush2.msra.mxu0 0.0
      %657 = vmatprep.subr.mxu0 0.0
      %658 = vmatpush2.msra.mxu0 0.0
      %659 = vmatprep.subr.mxu0 0.0
      %660 = vmatpush2.msra.mxu0 0.0
      %661 = vmatprep.subr.mxu0 0.0
      %662 = vmatpush2.msra.mxu0 0.0
      %663 = vmatprep.subr.mxu0 0.0
      %664 = vmatpush2.msra.mxu0 0.0
      %665 = vmatprep.subr.mxu0 0.0
      %666 = vmatpush2.msra.mxu0 0.0
      %667 = vmatprep.subr.mxu0 0.0
      %668 = vmatpush2.msra.mxu0 0.0
      %669 = vmatprep.subr.mxu0 0.0
      %670 = vmatpush2.msra.mxu0 0.0
      %671 = vmatprep.subr.mxu0 0.0
      %672 = vmatpush2.msra.mxu0 0.0
      %673 = vmatprep.subr.mxu0 0.0
      %674 = vmatpush2.msra.mxu0 0.0
      %675 = vmatprep.subr.mxu0 0.0
      %676 = vmatpush2.msra.mxu0 0.0
      %677 = vmatprep.subr.mxu0 0.0
      %678 = vmatpush2.msra.mxu0 0.0
      %679 = vmatprep.subr.mxu0 0.0
      %680 = vmatpush2.msra.mxu0 0.0
      %681 = vmatprep.subr.mxu0 0.0
      %682 = vmatpush2.msra.mxu0 0.0
      %683 = vmatprep.mubr.f32.mxu0 0.0
      %v684 = vand.u32 %v236, 4294901760
      %685 = vmatmul.mubr.f32.gmra.mxu0 %v684
      %v686 = vpop.f32.mrf.mxu0
      %v687 = vadd.f32 %v594, %v686
      %v688 = vpop.f32.mrf.mxu0
      %v689 = vadd.f32 %v596, %v688
      %690 = vmatprep.mubr.f32.mxu0 0.0
      %v691 = vand.u32 %v239, 4294901760
      %692 = vmatmul.mubr.f32.gmra.mxu0 %v691
      %v693 = vpop.f32.mrf.mxu0
      %v694 = vadd.f32 %v603, %v693
      %v695 = vpop.f32.mrf.mxu0
      %v696 = vadd.f32 %v605, %v695
      %697 = vdwg.mxu0
      %698 = vmatprep.subr.mxu0 0.0
      %699 = vmatpush1.msra.mxu0 0.0
      %700 = vmatprep.subr.mxu0 0.0
      %701 = vmatpush1.msra.mxu0 0.0
      %702 = vmatprep.subr.mxu0 0.0
      %703 = vmatpush1.msra.mxu0 0.0
      %704 = vmatprep.subr.mxu0 0.0
      %705 = vmatpush1.msra.mxu0 0.0
      %706 = vmatprep.subr.mxu0 0.0
      %707 = vmatpush1.msra.mxu0 0.0
      %708 = vmatprep.subr.mxu0 0.0
      %709 = vmatpush1.msra.mxu0 0.0
      %710 = vmatprep.subr.mxu0 0.0
      %711 = vmatpush1.msra.mxu0 0.0
      %712 = vmatprep.subr.mxu0 0.0
      %713 = vmatpush1.msra.mxu0 0.0
      %714 = vmatprep.subr.mxu0 0.0
      %715 = vmatpush1.msra.mxu0 0.0
      %716 = vmatprep.subr.mxu0 0.0
      %717 = vmatpush1.msra.mxu0 0.0
      %718 = vmatprep.subr.mxu0 0.0
      %719 = vmatpush1.msra.mxu0 0.0
      %720 = vmatprep.subr.mxu0 0.0
      %721 = vmatpush1.msra.mxu0 0.0
      %722 = vmatprep.subr.mxu0 0.0
      %723 = vmatpush1.msra.mxu0 0.0
      %724 = vmatprep.subr.mxu0 0.0
      %725 = vmatpush1.msra.mxu0 0.0
      %v726 = vand.u32 %v233, 4294901760
      %727 = vmatprep.subr.mxu0 %v726
      %v728 = vand.u32 %v232, 4294901760
      %729 = vmatpush1.msra.mxu0 %v728
      %v730 = vand.u32 %v231, 4294901760
      %731 = vmatprep.subr.mxu0 %v730
      %v732 = vand.u32 %v230, 4294901760
      %733 = vmatpush1.msra.mxu0 %v732
      %734 = vmatprep.subr.mxu0 0.0
      %735 = vmatpush2.msra.mxu0 0.0
      %736 = vmatprep.subr.mxu0 0.0
      %737 = vmatpush2.msra.mxu0 0.0
      %738 = vmatprep.subr.mxu0 0.0
      %739 = vmatpush2.msra.mxu0 0.0
      %740 = vmatprep.subr.mxu0 0.0
      %741 = vmatpush2.msra.mxu0 0.0
      %742 = vmatprep.subr.mxu0 0.0
      %743 = vmatpush2.msra.mxu0 0.0
      %744 = vmatprep.subr.mxu0 0.0
      %745 = vmatpush2.msra.mxu0 0.0
      %746 = vmatprep.subr.mxu0 0.0
      %747 = vmatpush2.msra.mxu0 0.0
      %748 = vmatprep.subr.mxu0 0.0
      %749 = vmatpush2.msra.mxu0 0.0
      %750 = vmatprep.subr.mxu0 0.0
      %751 = vmatpush2.msra.mxu0 0.0
      %752 = vmatprep.subr.mxu0 0.0
      %753 = vmatpush2.msra.mxu0 0.0
      %754 = vmatprep.subr.mxu0 0.0
      %755 = vmatpush2.msra.mxu0 0.0
      %756 = vmatprep.subr.mxu0 0.0
      %757 = vmatpush2.msra.mxu0 0.0
      %758 = vmatprep.subr.mxu0 0.0
      %759 = vmatpush2.msra.mxu0 0.0
      %760 = vmatprep.subr.mxu0 0.0
      %761 = vmatpush2.msra.mxu0 0.0
      %762 = vmatprep.subr.mxu0 0.0
      %763 = vmatpush2.msra.mxu0 0.0
      %764 = vmatprep.subr.mxu0 0.0
      %765 = vmatpush2.msra.mxu0 0.0
      %766 = vmatprep.mubr.f32.mxu0 0.0
      %v767 = vand.u32 %v236, 4294901760
      %768 = vmatmul.mubr.f32.gmra.mxu0 %v767
      %v769 = vpop.f32.mrf.mxu0
      %v770 = vadd.f32 %v687, %v769
      %v771 = vpop.f32.mrf.mxu0
      %v772 = vadd.f32 %v689, %v771
      %773 = vmatprep.mubr.f32.mxu0 0.0
      %v774 = vand.u32 %v239, 4294901760
      %775 = vmatmul.mubr.f32.gmra.mxu0 %v774
      %v776 = vpop.f32.mrf.mxu0
      %v777 = vadd.f32 %v694, %v776
      %v778 = vpop.f32.mrf.mxu0
      %v779 = vadd.f32 %v696, %v778
      %780 = vdwg.mxu0
      %781 = vst [vmem:[%s224] sm:$0xff] %v770
      %782 = vst [vmem:[%s224 + $0x8] sm:$0xff] %v772
      %784 = vset.pattern.permute.xlu0 0
      %785 = vperm.xlu0 %784, %v228
      %v786 = vpop.permute.xlu0 %785
      %v788 = vadd.f32 %v777, %v786
      %v789 = vadd.f32 %v779, %v786
      %v790 = vmax.f32 %v788, 0.0
      %v791 = vmax.f32 %v789, 0.0
      %s792 = scalar_lea.vmem %s2, 64
      %v793 = vld [vmem:[%s792] sm:$0xff]
      %v794 = vld [vmem:[%s792 + $0x8] sm:$0xff]
      %v795 = vmul.f32 %v793, %v790
      %v796 = vmul.f32 %v794, %v791
      %797 = vrot.lane.b32.xlu0 %v790, 17
      %v798 = vpop.permute.xlu0 %797
      %799 = vrot.lane.b32.xlu0 %v791, 17
      %v800 = vpop.permute.xlu0 %799
      %v801 = vlaneseq
      %v802 = vand.u32 %v801, 127
      %vm803 = vcmp.lt.s32.totalorder %v802, 17
      %v804 = vsel %vm803, %v798, %v800
      %v805 = vsel %vm803, %v800, %v798
      %v806 = vld [vmem:[%s2] sm:$0xff]
      %v807 = vld [vmem:[%s2 + $0x8] sm:$0xff]
      %v808 = vmul.f32 %v806, %v805
      %v809 = vmul.f32 %v807, %v804
      %v810 = vadd.f32 %v795, %v808
      %v811 = vadd.f32 %v796, %v809
      %812 = vrot.lane.b32.xlu0 %v790, 16
      %v813 = vpop.permute.xlu0 %812
      %814 = vrot.lane.b32.xlu0 %v791, 16
      %v815 = vpop.permute.xlu0 %814
      %vm816 = vcmp.lt.s32.totalorder %v802, 16
      %v817 = vsel %vm816, %v813, %v815
      %v818 = vsel %vm816, %v815, %v813
      %s819 = scalar_lea.vmem %s2, 16
      %v820 = vld [vmem:[%s819] sm:$0xff]
      %v821 = vld [vmem:[%s819 + $0x8] sm:$0xff]
      %v822 = vmul.f32 %v820, %v818
      %v823 = vmul.f32 %v821, %v817
      %v824 = vadd.f32 %v810, %v822
      %v825 = vadd.f32 %v811, %v823
      %826 = vrot.lane.b32.xlu0 %v790, 15
      %v827 = vpop.permute.xlu0 %826
      %828 = vrot.lane.b32.xlu0 %v791, 15
      %v829 = vpop.permute.xlu0 %828
      %vm830 = vcmp.lt.s32.totalorder %v802, 15
      %v831 = vsel %vm830, %v827, %v829
      %v832 = vsel %vm830, %v829, %v827
      %s833 = scalar_lea.vmem %s2, 32
      %v834 = vld [vmem:[%s833] sm:$0xff]
      %v835 = vld [vmem:[%s833 + $0x8] sm:$0xff]
      %v836 = vmul.f32 %v834, %v832
      %v837 = vmul.f32 %v835, %v831
      %v838 = vadd.f32 %v824, %v836
      %v839 = vadd.f32 %v825, %v837
      %840 = vrot.lane.b32.xlu0 %v790, 1
      %v841 = vpop.permute.xlu0 %840
      %842 = vrot.lane.b32.xlu0 %v791, 1
      %v843 = vpop.permute.xlu0 %842
      %vm844 = vcmp.lt.s32.totalorder %v802, 1
      %v845 = vsel %vm844, %v841, %v843
      %v846 = vsel %vm844, %v843, %v841
      %s847 = scalar_lea.vmem %s2, 48
      %v848 = vld [vmem:[%s847] sm:$0xff]
      %v849 = vld [vmem:[%s847 + $0x8] sm:$0xff]
      %v850 = vmul.f32 %v848, %v846
      %v851 = vmul.f32 %v849, %v845
      %v852 = vadd.f32 %v838, %v850
      %v853 = vadd.f32 %v839, %v851
      %854 = vrot.lane.b32.xlu0 %v790, 127
      %v855 = vpop.permute.xlu0 %854
      %856 = vrot.lane.b32.xlu0 %v791, 127
      %v857 = vpop.permute.xlu0 %856
      %vm858 = vcmp.lt.s32.totalorder %v802, 127
      %v859 = vsel %vm858, %v855, %v857
      %v860 = vsel %vm858, %v857, %v855
      %s861 = scalar_lea.vmem %s2, 80
      %v862 = vld [vmem:[%s861] sm:$0xff]
      %v863 = vld [vmem:[%s861 + $0x8] sm:$0xff]
      %v864 = vmul.f32 %v862, %v859
      %v865 = vmul.f32 %v863, %v860
      %v866 = vadd.f32 %v852, %v864
      %v867 = vadd.f32 %v853, %v865
      %868 = vrot.lane.b32.xlu0 %v790, 113
      %v869 = vpop.permute.xlu0 %868
      %870 = vrot.lane.b32.xlu0 %v791, 113
      %v871 = vpop.permute.xlu0 %870
      %vm872 = vcmp.lt.s32.totalorder %v802, 113
      %v873 = vsel %vm872, %v869, %v871
      %v874 = vsel %vm872, %v871, %v869
      %s875 = scalar_lea.vmem %s2, 96
      %v876 = vld [vmem:[%s875] sm:$0xff]
      %v877 = vld [vmem:[%s875 + $0x8] sm:$0xff]
      %v878 = vmul.f32 %v876, %v873
      %v879 = vmul.f32 %v877, %v874
      %v880 = vadd.f32 %v866, %v878
      %v881 = vadd.f32 %v867, %v879
      %882 = vrot.lane.b32.xlu0 %v790, 112
      %v883 = vpop.permute.xlu0 %882
      %884 = vrot.lane.b32.xlu0 %v791, 112
      %v885 = vpop.permute.xlu0 %884
      %vm886 = vcmp.lt.s32.totalorder %v802, 112
      %v887 = vsel %vm886, %v883, %v885
      %v888 = vsel %vm886, %v885, %v883
      %s889 = scalar_lea.vmem %s2, 112
      %v890 = vld [vmem:[%s889] sm:$0xff]
      %v891 = vld [vmem:[%s889 + $0x8] sm:$0xff]
      %v892 = vmul.f32 %v890, %v887
      %v893 = vmul.f32 %v891, %v888
      %v894 = vadd.f32 %v880, %v892
      %v895 = vadd.f32 %v881, %v893
      %896 = vrot.lane.b32.xlu0 %v790, 111
      %v897 = vpop.permute.xlu0 %896
      %898 = vrot.lane.b32.xlu0 %v791, 111
      %v899 = vpop.permute.xlu0 %898
      %vm900 = vcmp.lt.s32.totalorder %v802, 111
      %v901 = vsel %vm900, %v897, %v899
      %v902 = vsel %vm900, %v899, %v897
      %s903 = scalar_lea.vmem %s2, 128
      %v904 = vld [vmem:[%s903] sm:$0xff]
      %v905 = vld [vmem:[%s903 + $0x8] sm:$0xff]
      %v906 = vmul.f32 %v904, %v901
      %v907 = vmul.f32 %v905, %v902
      %v908 = vadd.f32 %v894, %v906
      %v909 = vadd.f32 %v895, %v907
      %911 = vset.pattern.permute.xlu0 0
      %912 = vperm.xlu0 %911, %v229
      %v913 = vpop.permute.xlu0 %912
      %vm915 = vcmask 64512
      %v917 = vsel %vm915, %v227, 0
      %919 = vmatprep.subr.mxu0 0.0
      %920 = vmatpush1.msra.mxu0 0.0
      %921 = vmatprep.subr.mxu0 0.0
      %922 = vmatpush1.msra.mxu0 0.0
      %923 = vmatprep.subr.mxu0 0.0
      %924 = vmatpush1.msra.mxu0 0.0
      %925 = vmatprep.subr.mxu0 0.0
      %926 = vmatpush1.msra.mxu0 0.0
      %927 = vmatprep.subr.mxu0 0.0
      %928 = vmatpush1.msra.mxu0 0.0
      %929 = vmatprep.subr.mxu0 0.0
      %930 = vmatpush1.msra.mxu0 0.0
      %931 = vmatprep.subr.mxu0 0.0
      %932 = vmatpush1.msra.mxu0 0.0
      %933 = vmatprep.subr.mxu0 0.0
      %934 = vmatpush1.msra.mxu0 0.0
      %935 = vmatprep.subr.mxu0 0.0
      %936 = vmatpush1.msra.mxu0 0.0
      %937 = vmatprep.subr.mxu0 0.0
      %938 = vmatpush1.msra.mxu0 0.0
      %939 = vmatprep.subr.mxu0 0.0
      %940 = vmatpush1.msra.mxu0 0.0
      %941 = vmatprep.subr.mxu0 0.0
      %942 = vmatpush1.msra.mxu0 0.0
      %943 = vmatprep.subr.mxu0 0.0
      %944 = vmatpush1.msra.mxu0 0.0
      %945 = vmatprep.subr.mxu0 0.0
      %946 = vmatpush1.msra.mxu0 0.0
      %947 = vmatprep.subr.mxu0 0.0
      %948 = vmatpush1.msra.mxu0 0.0
      %v949 = vand.u32 %v909, 4294901760
      %950 = vmatprep.subr.mxu0 %v949
      %v951 = vand.u32 %v908, 4294901760
      %952 = vmatpush1.msra.mxu0 %v951
      %953 = vmatprep.subr.mxu0 0.0
      %954 = vmatpush2.msra.mxu0 0.0
      %955 = vmatprep.subr.mxu0 0.0
      %956 = vmatpush2.msra.mxu0 0.0
      %957 = vmatprep.subr.mxu0 0.0
      %958 = vmatpush2.msra.mxu0 0.0
      %959 = vmatprep.subr.mxu0 0.0
      %960 = vmatpush2.msra.mxu0 0.0
      %961 = vmatprep.subr.mxu0 0.0
      %962 = vmatpush2.msra.mxu0 0.0
      %963 = vmatprep.subr.mxu0 0.0
      %964 = vmatpush2.msra.mxu0 0.0
      %965 = vmatprep.subr.mxu0 0.0
      %966 = vmatpush2.msra.mxu0 0.0
      %967 = vmatprep.subr.mxu0 0.0
      %968 = vmatpush2.msra.mxu0 0.0
      %969 = vmatprep.subr.mxu0 0.0
      %970 = vmatpush2.msra.mxu0 0.0
      %971 = vmatprep.subr.mxu0 0.0
      %972 = vmatpush2.msra.mxu0 0.0
      %973 = vmatprep.subr.mxu0 0.0
      %974 = vmatpush2.msra.mxu0 0.0
      %975 = vmatprep.subr.mxu0 0.0
      %976 = vmatpush2.msra.mxu0 0.0
      %977 = vmatprep.subr.mxu0 0.0
      %978 = vmatpush2.msra.mxu0 0.0
      %979 = vmatprep.subr.mxu0 0.0
      %980 = vmatpush2.msra.mxu0 0.0
      %981 = vmatprep.subr.mxu0 0.0
      %982 = vmatpush2.msra.mxu0 0.0
      %983 = vmatprep.subr.mxu0 0.0
      %984 = vmatpush2.msra.mxu0 0.0
      %985 = vmatprep.mubr.f32.mxu0 0.0
      %v986 = vand.u32 %v917, 4294901760
      %v987 = vsub.f32 %v917, %v986
      %v988 = vand.u32 %v987, 4294901760
      %v989 = vsub.f32 %v987, %v988
      %v990 = vand.u32 %v989, 4294901760
      %991 = vmatmul.mubr.f32.gmra.mxu0 %v990
      %v992 = vpop.f32.mrf.mxu0
      %v993 = vadd.f32 %v913, %v992
      %v994 = vpop.f32.mrf.mxu0
      %v995 = vadd.f32 %v913, %v994
      %996 = vdwg.mxu0
      %997 = vmatprep.subr.mxu0 0.0
      %998 = vmatpush1.msra.mxu0 0.0
      %999 = vmatprep.subr.mxu0 0.0
      %1000 = vmatpush1.msra.mxu0 0.0
      %1001 = vmatprep.subr.mxu0 0.0
      %1002 = vmatpush1.msra.mxu0 0.0
      %1003 = vmatprep.subr.mxu0 0.0
      %1004 = vmatpush1.msra.mxu0 0.0
      %1005 = vmatprep.subr.mxu0 0.0
      %1006 = vmatpush1.msra.mxu0 0.0
      %1007 = vmatprep.subr.mxu0 0.0
      %1008 = vmatpush1.msra.mxu0 0.0
      %1009 = vmatprep.subr.mxu0 0.0
      %1010 = vmatpush1.msra.mxu0 0.0
      %1011 = vmatprep.subr.mxu0 0.0
      %1012 = vmatpush1.msra.mxu0 0.0
      %1013 = vmatprep.subr.mxu0 0.0
      %1014 = vmatpush1.msra.mxu0 0.0
      %1015 = vmatprep.subr.mxu0 0.0
      %1016 = vmatpush1.msra.mxu0 0.0
      %1017 = vmatprep.subr.mxu0 0.0
      %1018 = vmatpush1.msra.mxu0 0.0
      %1019 = vmatprep.subr.mxu0 0.0
      %1020 = vmatpush1.msra.mxu0 0.0
      %1021 = vmatprep.subr.mxu0 0.0
      %1022 = vmatpush1.msra.mxu0 0.0
      %1023 = vmatprep.subr.mxu0 0.0
      %1024 = vmatpush1.msra.mxu0 0.0
      %1025 = vmatprep.subr.mxu0 0.0
      %1026 = vmatpush1.msra.mxu0 0.0
      %v1027 = vand.u32 %v909, 4294901760
      %v1028 = vsub.f32 %v909, %v1027
      %v1029 = vand.u32 %v1028, 4294901760
      %v1030 = vsub.f32 %v1028, %v1029
      %v1031 = vand.u32 %v1030, 4294901760
      %1032 = vmatprep.subr.mxu0 %v1031
      %v1033 = vand.u32 %v908, 4294901760
      %v1034 = vsub.f32 %v908, %v1033
      %v1035 = vand.u32 %v1034, 4294901760
      %v1036 = vsub.f32 %v1034, %v1035
      %v1037 = vand.u32 %v1036, 4294901760
      %1038 = vmatpush1.msra.mxu0 %v1037
      %1039 = vmatprep.subr.mxu0 0.0
      %1040 = vmatpush2.msra.mxu0 0.0
      %1041 = vmatprep.subr.mxu0 0.0
      %1042 = vmatpush2.msra.mxu0 0.0
      %1043 = vmatprep.subr.mxu0 0.0
      %1044 = vmatpush2.msra.mxu0 0.0
      %1045 = vmatprep.subr.mxu0 0.0
      %1046 = vmatpush2.msra.mxu0 0.0
      %1047 = vmatprep.subr.mxu0 0.0
      %1048 = vmatpush2.msra.mxu0 0.0
      %1049 = vmatprep.subr.mxu0 0.0
      %1050 = vmatpush2.msra.mxu0 0.0
      %1051 = vmatprep.subr.mxu0 0.0
      %1052 = vmatpush2.msra.mxu0 0.0
      %1053 = vmatprep.subr.mxu0 0.0
      %1054 = vmatpush2.msra.mxu0 0.0
      %1055 = vmatprep.subr.mxu0 0.0
      %1056 = vmatpush2.msra.mxu0 0.0
      %1057 = vmatprep.subr.mxu0 0.0
      %1058 = vmatpush2.msra.mxu0 0.0
      %1059 = vmatprep.subr.mxu0 0.0
      %1060 = vmatpush2.msra.mxu0 0.0
      %1061 = vmatprep.subr.mxu0 0.0
      %1062 = vmatpush2.msra.mxu0 0.0
      %1063 = vmatprep.subr.mxu0 0.0
      %1064 = vmatpush2.msra.mxu0 0.0
      %1065 = vmatprep.subr.mxu0 0.0
      %1066 = vmatpush2.msra.mxu0 0.0
      %1067 = vmatprep.subr.mxu0 0.0
      %1068 = vmatpush2.msra.mxu0 0.0
      %1069 = vmatprep.subr.mxu0 0.0
      %1070 = vmatpush2.msra.mxu0 0.0
      %1071 = vmatprep.mubr.f32.mxu0 0.0
      %v1072 = vand.u32 %v917, 4294901760
      %1073 = vmatmul.mubr.f32.gmra.mxu0 %v1072
      %v1074 = vpop.f32.mrf.mxu0
      %v1075 = vadd.f32 %v993, %v1074
      %v1076 = vpop.f32.mrf.mxu0
      %v1077 = vadd.f32 %v995, %v1076
      %1078 = vdwg.mxu0
      %1079 = vmatprep.subr.mxu0 0.0
      %1080 = vmatpush1.msra.mxu0 0.0
      %1081 = vmatprep.subr.mxu0 0.0
      %1082 = vmatpush1.msra.mxu0 0.0
      %1083 = vmatprep.subr.mxu0 0.0
      %1084 = vmatpush1.msra.mxu0 0.0
      %1085 = vmatprep.subr.mxu0 0.0
      %1086 = vmatpush1.msra.mxu0 0.0
      %1087 = vmatprep.subr.mxu0 0.0
      %1088 = vmatpush1.msra.mxu0 0.0
      %1089 = vmatprep.subr.mxu0 0.0
      %1090 = vmatpush1.msra.mxu0 0.0
      %1091 = vmatprep.subr.mxu0 0.0
      %1092 = vmatpush1.msra.mxu0 0.0
      %1093 = vmatprep.subr.mxu0 0.0
      %1094 = vmatpush1.msra.mxu0 0.0
      %1095 = vmatprep.subr.mxu0 0.0
      %1096 = vmatpush1.msra.mxu0 0.0
      %1097 = vmatprep.subr.mxu0 0.0
      %1098 = vmatpush1.msra.mxu0 0.0
      %1099 = vmatprep.subr.mxu0 0.0
      %1100 = vmatpush1.msra.mxu0 0.0
      %1101 = vmatprep.subr.mxu0 0.0
      %1102 = vmatpush1.msra.mxu0 0.0
      %1103 = vmatprep.subr.mxu0 0.0
      %1104 = vmatpush1.msra.mxu0 0.0
      %1105 = vmatprep.subr.mxu0 0.0
      %1106 = vmatpush1.msra.mxu0 0.0
      %1107 = vmatprep.subr.mxu0 0.0
      %1108 = vmatpush1.msra.mxu0 0.0
      %v1109 = vand.u32 %v909, 4294901760
      %v1110 = vsub.f32 %v909, %v1109
      %1111 = vmatprep.subr.mxu0 %v1110
      %v1112 = vand.u32 %v908, 4294901760
      %v1113 = vsub.f32 %v908, %v1112
      %1114 = vmatpush1.msra.mxu0 %v1113
      %1115 = vmatprep.subr.mxu0 0.0
      %1116 = vmatpush2.msra.mxu0 0.0
      %1117 = vmatprep.subr.mxu0 0.0
      %1118 = vmatpush2.msra.mxu0 0.0
      %1119 = vmatprep.subr.mxu0 0.0
      %1120 = vmatpush2.msra.mxu0 0.0
      %1121 = vmatprep.subr.mxu0 0.0
      %1122 = vmatpush2.msra.mxu0 0.0
      %1123 = vmatprep.subr.mxu0 0.0
      %1124 = vmatpush2.msra.mxu0 0.0
      %1125 = vmatprep.subr.mxu0 0.0
      %1126 = vmatpush2.msra.mxu0 0.0
      %1127 = vmatprep.subr.mxu0 0.0
      %1128 = vmatpush2.msra.mxu0 0.0
      %1129 = vmatprep.subr.mxu0 0.0
      %1130 = vmatpush2.msra.mxu0 0.0
      %1131 = vmatprep.subr.mxu0 0.0
      %1132 = vmatpush2.msra.mxu0 0.0
      %1133 = vmatprep.subr.mxu0 0.0
      %1134 = vmatpush2.msra.mxu0 0.0
      %1135 = vmatprep.subr.mxu0 0.0
      %1136 = vmatpush2.msra.mxu0 0.0
      %1137 = vmatprep.subr.mxu0 0.0
      %1138 = vmatpush2.msra.mxu0 0.0
      %1139 = vmatprep.subr.mxu0 0.0
      %1140 = vmatpush2.msra.mxu0 0.0
      %1141 = vmatprep.subr.mxu0 0.0
      %1142 = vmatpush2.msra.mxu0 0.0
      %1143 = vmatprep.subr.mxu0 0.0
      %1144 = vmatpush2.msra.mxu0 0.0
      %1145 = vmatprep.subr.mxu0 0.0
      %1146 = vmatpush2.msra.mxu0 0.0
      %1147 = vmatprep.mubr.f32.mxu0 0.0
      %v1148 = vand.u32 %v917, 4294901760
      %v1149 = vsub.f32 %v917, %v1148
      %1150 = vmatmul.mubr.f32.gmra.mxu0 %v1149
      %v1151 = vpop.f32.mrf.mxu0
      %v1152 = vadd.f32 %v1075, %v1151
      %v1153 = vpop.f32.mrf.mxu0
      %v1154 = vadd.f32 %v1077, %v1153
      %1155 = vdwg.mxu0
      %1156 = vmatprep.subr.mxu0 0.0
      %1157 = vmatpush1.msra.mxu0 0.0
      %1158 = vmatprep.subr.mxu0 0.0
      %1159 = vmatpush1.msra.mxu0 0.0
      %1160 = vmatprep.subr.mxu0 0.0
      %1161 = vmatpush1.msra.mxu0 0.0
      %1162 = vmatprep.subr.mxu0 0.0
      %1163 = vmatpush1.msra.mxu0 0.0
      %1164 = vmatprep.subr.mxu0 0.0
      %1165 = vmatpush1.msra.mxu0 0.0
      %1166 = vmatprep.subr.mxu0 0.0
      %1167 = vmatpush1.msra.mxu0 0.0
      %1168 = vmatprep.subr.mxu0 0.0
      %1169 = vmatpush1.msra.mxu0 0.0
      %1170 = vmatprep.subr.mxu0 0.0
      %1171 = vmatpush1.msra.mxu0 0.0
      %1172 = vmatprep.subr.mxu0 0.0
      %1173 = vmatpush1.msra.mxu0 0.0
      %1174 = vmatprep.subr.mxu0 0.0
      %1175 = vmatpush1.msra.mxu0 0.0
      %1176 = vmatprep.subr.mxu0 0.0
      %1177 = vmatpush1.msra.mxu0 0.0
      %1178 = vmatprep.subr.mxu0 0.0
      %1179 = vmatpush1.msra.mxu0 0.0
      %1180 = vmatprep.subr.mxu0 0.0
      %1181 = vmatpush1.msra.mxu0 0.0
      %1182 = vmatprep.subr.mxu0 0.0
      %1183 = vmatpush1.msra.mxu0 0.0
      %1184 = vmatprep.subr.mxu0 0.0
      %1185 = vmatpush1.msra.mxu0 0.0
      %v1186 = vand.u32 %v909, 4294901760
      %1187 = vmatprep.subr.mxu0 %v1186
      %v1188 = vand.u32 %v908, 4294901760
      %1189 = vmatpush1.msra.mxu0 %v1188
      %1190 = vmatprep.subr.mxu0 0.0
      %1191 = vmatpush2.msra.mxu0 0.0
      %1192 = vmatprep.subr.mxu0 0.0
      %1193 = vmatpush2.msra.mxu0 0.0
      %1194 = vmatprep.subr.mxu0 0.0
      %1195 = vmatpush2.msra.mxu0 0.0
      %1196 = vmatprep.subr.mxu0 0.0
      %1197 = vmatpush2.msra.mxu0 0.0
      %1198 = vmatprep.subr.mxu0 0.0
      %1199 = vmatpush2.msra.mxu0 0.0
      %1200 = vmatprep.subr.mxu0 0.0
      %1201 = vmatpush2.msra.mxu0 0.0
      %1202 = vmatprep.subr.mxu0 0.0
      %1203 = vmatpush2.msra.mxu0 0.0
      %1204 = vmatprep.subr.mxu0 0.0
      %1205 = vmatpush2.msra.mxu0 0.0
      %1206 = vmatprep.subr.mxu0 0.0
      %1207 = vmatpush2.msra.mxu0 0.0
      %1208 = vmatprep.subr.mxu0 0.0
      %1209 = vmatpush2.msra.mxu0 0.0
      %1210 = vmatprep.subr.mxu0 0.0
      %1211 = vmatpush2.msra.mxu0 0.0
      %1212 = vmatprep.subr.mxu0 0.0
      %1213 = vmatpush2.msra.mxu0 0.0
      %1214 = vmatprep.subr.mxu0 0.0
      %1215 = vmatpush2.msra.mxu0 0.0
      %1216 = vmatprep.subr.mxu0 0.0
      %1217 = vmatpush2.msra.mxu0 0.0
      %1218 = vmatprep.subr.mxu0 0.0
      %1219 = vmatpush2.msra.mxu0 0.0
      %1220 = vmatprep.subr.mxu0 0.0
      %1221 = vmatpush2.msra.mxu0 0.0
      %1222 = vmatprep.mubr.f32.mxu0 0.0
      %v1223 = vand.u32 %v917, 4294901760
      %v1224 = vsub.f32 %v917, %v1223
      %v1225 = vand.u32 %v1224, 4294901760
      %1226 = vmatmul.mubr.f32.gmra.mxu0 %v1225
      %v1227 = vpop.f32.mrf.mxu0
      %v1228 = vadd.f32 %v1152, %v1227
      %v1229 = vpop.f32.mrf.mxu0
      %v1230 = vadd.f32 %v1154, %v1229
      %1231 = vdwg.mxu0
      %1232 = vmatprep.subr.mxu0 0.0
      %1233 = vmatpush1.msra.mxu0 0.0
      %1234 = vmatprep.subr.mxu0 0.0
      %1235 = vmatpush1.msra.mxu0 0.0
      %1236 = vmatprep.subr.mxu0 0.0
      %1237 = vmatpush1.msra.mxu0 0.0
      %1238 = vmatprep.subr.mxu0 0.0
      %1239 = vmatpush1.msra.mxu0 0.0
      %1240 = vmatprep.subr.mxu0 0.0
      %1241 = vmatpush1.msra.mxu0 0.0
      %1242 = vmatprep.subr.mxu0 0.0
      %1243 = vmatpush1.msra.mxu0 0.0
      %1244 = vmatprep.subr.mxu0 0.0
      %1245 = vmatpush1.msra.mxu0 0.0
      %1246 = vmatprep.subr.mxu0 0.0
      %1247 = vmatpush1.msra.mxu0 0.0
      %1248 = vmatprep.subr.mxu0 0.0
      %1249 = vmatpush1.msra.mxu0 0.0
      %1250 = vmatprep.subr.mxu0 0.0
      %1251 = vmatpush1.msra.mxu0 0.0
      %1252 = vmatprep.subr.mxu0 0.0
      %1253 = vmatpush1.msra.mxu0 0.0
      %1254 = vmatprep.subr.mxu0 0.0
      %1255 = vmatpush1.msra.mxu0 0.0
      %1256 = vmatprep.subr.mxu0 0.0
      %1257 = vmatpush1.msra.mxu0 0.0
      %1258 = vmatprep.subr.mxu0 0.0
      %1259 = vmatpush1.msra.mxu0 0.0
      %1260 = vmatprep.subr.mxu0 0.0
      %1261 = vmatpush1.msra.mxu0 0.0
      %v1262 = vand.u32 %v909, 4294901760
      %v1263 = vsub.f32 %v909, %v1262
      %v1264 = vand.u32 %v1263, 4294901760
      %1265 = vmatprep.subr.mxu0 %v1264
      %v1266 = vand.u32 %v908, 4294901760
      %v1267 = vsub.f32 %v908, %v1266
      %v1268 = vand.u32 %v1267, 4294901760
      %1269 = vmatpush1.msra.mxu0 %v1268
      %1270 = vmatprep.subr.mxu0 0.0
      %1271 = vmatpush2.msra.mxu0 0.0
      %1272 = vmatprep.subr.mxu0 0.0
      %1273 = vmatpush2.msra.mxu0 0.0
      %1274 = vmatprep.subr.mxu0 0.0
      %1275 = vmatpush2.msra.mxu0 0.0
      %1276 = vmatprep.subr.mxu0 0.0
      %1277 = vmatpush2.msra.mxu0 0.0
      %1278 = vmatprep.subr.mxu0 0.0
      %1279 = vmatpush2.msra.mxu0 0.0
      %1280 = vmatprep.subr.mxu0 0.0
      %1281 = vmatpush2.msra.mxu0 0.0
      %1282 = vmatprep.subr.mxu0 0.0
      %1283 = vmatpush2.msra.mxu0 0.0
      %1284 = vmatprep.subr.mxu0 0.0
      %1285 = vmatpush2.msra.mxu0 0.0
      %1286 = vmatprep.subr.mxu0 0.0
      %1287 = vmatpush2.msra.mxu0 0.0
      %1288 = vmatprep.subr.mxu0 0.0
      %1289 = vmatpush2.msra.mxu0 0.0
      %1290 = vmatprep.subr.mxu0 0.0
      %1291 = vmatpush2.msra.mxu0 0.0
      %1292 = vmatprep.subr.mxu0 0.0
      %1293 = vmatpush2.msra.mxu0 0.0
      %1294 = vmatprep.subr.mxu0 0.0
      %1295 = vmatpush2.msra.mxu0 0.0
      %1296 = vmatprep.subr.mxu0 0.0
      %1297 = vmatpush2.msra.mxu0 0.0
      %1298 = vmatprep.subr.mxu0 0.0
      %1299 = vmatpush2.msra.mxu0 0.0
      %1300 = vmatprep.subr.mxu0 0.0
      %1301 = vmatpush2.msra.mxu0 0.0
      %1302 = vmatprep.mubr.f32.mxu0 0.0
      %v1303 = vand.u32 %v917, 4294901760
      %1304 = vmatmul.mubr.f32.gmra.mxu0 %v1303
      %v1305 = vpop.f32.mrf.mxu0
      %v1306 = vadd.f32 %v1228, %v1305
      %v1307 = vpop.f32.mrf.mxu0
      %v1308 = vadd.f32 %v1230, %v1307
      %1309 = vdwg.mxu0
      %1310 = vmatprep.subr.mxu0 0.0
      %1311 = vmatpush1.msra.mxu0 0.0
      %1312 = vmatprep.subr.mxu0 0.0
      %1313 = vmatpush1.msra.mxu0 0.0
      %1314 = vmatprep.subr.mxu0 0.0
      %1315 = vmatpush1.msra.mxu0 0.0
      %1316 = vmatprep.subr.mxu0 0.0
      %1317 = vmatpush1.msra.mxu0 0.0
      %1318 = vmatprep.subr.mxu0 0.0
      %1319 = vmatpush1.msra.mxu0 0.0
      %1320 = vmatprep.subr.mxu0 0.0
      %1321 = vmatpush1.msra.mxu0 0.0
      %1322 = vmatprep.subr.mxu0 0.0
      %1323 = vmatpush1.msra.mxu0 0.0
      %1324 = vmatprep.subr.mxu0 0.0
      %1325 = vmatpush1.msra.mxu0 0.0
      %1326 = vmatprep.subr.mxu0 0.0
      %1327 = vmatpush1.msra.mxu0 0.0
      %1328 = vmatprep.subr.mxu0 0.0
      %1329 = vmatpush1.msra.mxu0 0.0
      %1330 = vmatprep.subr.mxu0 0.0
      %1331 = vmatpush1.msra.mxu0 0.0
      %1332 = vmatprep.subr.mxu0 0.0
      %1333 = vmatpush1.msra.mxu0 0.0
      %1334 = vmatprep.subr.mxu0 0.0
      %1335 = vmatpush1.msra.mxu0 0.0
      %1336 = vmatprep.subr.mxu0 0.0
      %1337 = vmatpush1.msra.mxu0 0.0
      %1338 = vmatprep.subr.mxu0 0.0
      %1339 = vmatpush1.msra.mxu0 0.0
      %v1340 = vand.u32 %v909, 4294901760
      %1341 = vmatprep.subr.mxu0 %v1340
      %v1342 = vand.u32 %v908, 4294901760
      %1343 = vmatpush1.msra.mxu0 %v1342
      %1344 = vmatprep.subr.mxu0 0.0
      %1345 = vmatpush2.msra.mxu0 0.0
      %1346 = vmatprep.subr.mxu0 0.0
      %1347 = vmatpush2.msra.mxu0 0.0
      %1348 = vmatprep.subr.mxu0 0.0
      %1349 = vmatpush2.msra.mxu0 0.0
      %1350 = vmatprep.subr.mxu0 0.0
      %1351 = vmatpush2.msra.mxu0 0.0
      %1352 = vmatprep.subr.mxu0 0.0
      %1353 = vmatpush2.msra.mxu0 0.0
      %1354 = vmatprep.subr.mxu0 0.0
      %1355 = vmatpush2.msra.mxu0 0.0
      %1356 = vmatprep.subr.mxu0 0.0
      %1357 = vmatpush2.msra.mxu0 0.0
      %1358 = vmatprep.subr.mxu0 0.0
      %1359 = vmatpush2.msra.mxu0 0.0
      %1360 = vmatprep.subr.mxu0 0.0
      %1361 = vmatpush2.msra.mxu0 0.0
      %1362 = vmatprep.subr.mxu0 0.0
      %1363 = vmatpush2.msra.mxu0 0.0
      %1364 = vmatprep.subr.mxu0 0.0
      %1365 = vmatpush2.msra.mxu0 0.0
      %1366 = vmatprep.subr.mxu0 0.0
      %1367 = vmatpush2.msra.mxu0 0.0
      %1368 = vmatprep.subr.mxu0 0.0
      %1369 = vmatpush2.msra.mxu0 0.0
      %1370 = vmatprep.subr.mxu0 0.0
      %1371 = vmatpush2.msra.mxu0 0.0
      %1372 = vmatprep.subr.mxu0 0.0
      %1373 = vmatpush2.msra.mxu0 0.0
      %1374 = vmatprep.subr.mxu0 0.0
      %1375 = vmatpush2.msra.mxu0 0.0
      %1376 = vmatprep.mubr.f32.mxu0 0.0
      %v1377 = vand.u32 %v917, 4294901760
      %1378 = vmatmul.mubr.f32.gmra.mxu0 %v1377
      %v1379 = vpop.f32.mrf.mxu0
      %v1380 = vadd.f32 %v1306, %v1379
      %v1381 = vpop.f32.mrf.mxu0
      %v1382 = vadd.f32 %v1308, %v1381
      %1383 = vdwg.mxu0
      %v1384 = vmax.f32 %v1380, 0.0
      %v1385 = vmax.f32 %v1382, 0.0
      %1386 = vst [vmem:[%s224 + $0x10] sm:$0xff] %v1384
      %1387 = vst [vmem:[%s224 + $0x18] sm:$0xff] %v1385
      %p1388 = scmp.lt.s32.totalorder %s16, 1
      %s1389 = scalar_select %p1388, %s16, 1
      %s1390 = smul.addr %s1389, 4
      %s1391 = smul.addr %s1390, 8
      %s1392 = scalar_lea.vmem %s5, %s1391
      // Predicated region
      $region41: #{shuffle_block_pallas.1} parent=39 // pred_check
        %p1393 = pneg %p144
      $region42: #{shuffle_block_pallas.1} parent=39 // pred_check_branch
        %1395 = sbr.rel (%p1393) target = $region44
      $region43: #{shuffle_block_pallas.1} parent=39 // pred_region
        _
      $region44: #{shuffle_block_pallas.1} parent=39 // pred_fallthru
        _
    $region40: #{shuffle_block_pallas.1} parent=5 // pred_fallthru
      _
    %p1396 = scmp.le.s32.totalorder 2, %s11
    // Predicated region
    $region45: #{shuffle_block_pallas.1} parent=5 // pred_check
      %p1397 = pneg %p1396
    $region46: #{shuffle_block_pallas.1} parent=5 // pred_check_branch
      %1399 = sbr.rel (%p1397) target = $region48
    $region47: #{shuffle_block_pallas.1} parent=5 // pred_region
      %s1400 = ssub.s32 %s11, 2
      // Predicated region
      $region49: #{shuffle_block_pallas.1} parent=47 // pred_check
        %p1401 = pneg %p150
      $region50: #{shuffle_block_pallas.1} parent=47 // pred_check_branch
        %1403 = sbr.rel (%p1401) target = $region52
      $region51: #{shuffle_block_pallas.1} parent=47 // pred_region
        %p1404 = scmp.lt.s32.totalorder %s17, 1
        %s1405 = scalar_select %p1404, %s17, 1
        %s1406 = smul.addr %s1405, 4
        %s1407 = smul.addr %s1406, 8
        %s1408 = scalar_lea.vmem %s5, %s1407
      $region52: #{shuffle_block_pallas.1} parent=47 // pred_fallthru
        _
    $region48: #{shuffle_block_pallas.1} parent=5 // pred_fallthru
      _
  $region6: #{shuffle_block_pallas.1} parent=0 // loop_footer
    %s15 = sadd.s32 1, %s11
  $region7: #{shuffle_block_pallas.1} parent=0 // loop_footer_branch
    %10 = sbr.rel target = $region3
  $region8: #{shuffle_block_pallas.1} parent=0 // loop_exit
    _

</llo_original>
